<compile_context>
chip_gen: v7x
topology: tpu7x:2x2x1
jax: 0.10.0
libtpu: 0.0.40
codegen_flags: <defaults>
</compile_context>

<pallas_src>
import math
import jax
import jax.numpy as jnp
from jax.experimental import pallas as pl
from jax.experimental.pallas import tpu as pltpu


# ---------------------------------------------------------------------------
# Fused whole-forward kernel
# ---------------------------------------------------------------------------

def _make_fused_kernel(num_layers, num_heads, head_dim, hidden, eps=1e-12):
    scale = 1.0 / math.sqrt(head_dim)
    c_gelu = math.sqrt(2.0 / math.pi)
    H = hidden
    Dh = head_dim

    def _mm(a, b):
        # bf16 MXU inputs, f32 accumulation.
        return jnp.dot(a.astype(jnp.bfloat16), b.astype(jnp.bfloat16),
                       preferred_element_type=jnp.float32)

    def _mm_nt(a, b):
        # a @ b.T without materializing a transpose (MXU handles trans_b).
        return jax.lax.dot_general(
            a.astype(jnp.bfloat16), b.astype(jnp.bfloat16),
            (((1,), (1,)), ((), ())), preferred_element_type=jnp.float32)

    def _ln(x, g, b):
        mu = jnp.mean(x, axis=-1, keepdims=True)
        var = jnp.mean(jnp.square(x - mu), axis=-1, keepdims=True)
        return (x - mu) * jax.lax.rsqrt(var + eps) * g + b

    def kernel(emb_ref, bias_ref, emb_g_ref, emb_b_ref,
               wqkv_ref, bqkv_ref, wo_ref, bo_ref, ln1_g_ref, ln1_b_ref,
               w1_ref, b1_ref, w2_ref, b2_ref, ln2_g_ref, ln2_b_ref,
               pool_w_ref, pool_b_ref, cls_w_ref, cls_b_ref,
               logits_ref):
        # --- embeddings LayerNorm (no fake zero residual) ---
        h = _ln(emb_ref[0], emb_g_ref[...], emb_b_ref[...])      # (S, H) f32
        bias = bias_ref[0]                                       # (1, S) additive mask

        # --- encoder layers (static, unrolled) ---
        for l in range(num_layers):
            # fused QKV projection: one (S,H)x(H,3H) matmul
            qkv = _mm(h, wqkv_ref[l]) + bqkv_ref[l]              # (S, 3H)

            wo_l = wo_ref[l]                                     # (H, H)
            attn = jnp.zeros_like(h)                             # (S, H)
            for hd in range(num_heads):                          # static, unrolled
                q = qkv[:, hd * Dh:(hd + 1) * Dh]                # (S, Dh)
                k = qkv[:, H + hd * Dh:H + (hd + 1) * Dh]
                v = qkv[:, 2 * H + hd * Dh:2 * H + (hd + 1) * Dh]
                s = _mm_nt(q, k) * scale + bias                  # (S, S)
                s = s - jnp.max(s, axis=-1, keepdims=True)
                p = jnp.exp(s)
                p = p * pl.reciprocal(jnp.sum(p, axis=-1, keepdims=True),
                                      approx=True)
                ctx = _mm(p, v)                                  # (S, Dh)
                # fold head context directly into the output projection
                attn = attn + _mm(ctx, wo_l[hd * Dh:(hd + 1) * Dh, :])
            attn = attn + bo_ref[l]
            h = _ln(attn + h, ln1_g_ref[l], ln1_b_ref[l])

            # FFN with tanh-approx GELU (EUP path); f32 elementwise math
            inter = _mm(h, w1_ref[l]) + b1_ref[l]                # (S, I)
            inter = 0.5 * inter * (1.0 + jnp.tanh(
                c_gelu * (inter + 0.044715 * inter * inter * inter)))
            ffn = _mm(inter, w2_ref[l]) + b2_ref[l]
            h = _ln(ffn + h, ln2_g_ref[l], ln2_b_ref[l])

        # --- pooler (tanh on CLS token) + classifier, fused in the same kernel ---
        cls_tok = h[0:1, :]                                      # (1, H)
        pooled = jnp.tanh(_mm(cls_tok, pool_w_ref[...]) + pool_b_ref[...])
        # dropout(pooled) is identity at inference
        logits_ref[0] = (_mm(pooled, cls_w_ref[...])
                         + cls_b_ref[...]).astype(logits_ref.dtype)

    return kernel


# ---------------------------------------------------------------------------
# Parameter construction (deterministic, synthetic "BERT-tiny")
# ---------------------------------------------------------------------------

def make_params(key, *, vocab=100, max_pos=16, type_vocab=2,
                hidden=32, heads=2, intermediate=64, layers=2, num_labels=4):
    def nrm(k, shape, s=0.02):
        return s * jax.random.normal(k, shape, dtype=jnp.float32)

    keys = iter(jax.random.split(key, 8 + layers * 16))
    p = {
        "hidden": hidden, "num_heads": heads, "num_labels": num_labels,
        "word_emb": nrm(next(keys), (vocab, hidden)),
        "pos_emb": nrm(next(keys), (max_pos, hidden)),
        "type_emb": nrm(next(keys), (type_vocab, hidden)),
        "emb_ln_g": jnp.ones((hidden,), jnp.float32),
        "emb_ln_b": jnp.zeros((hidden,), jnp.float32),
        "pool_w": nrm(next(keys), (hidden, hidden)),
        "pool_b": jnp.zeros((hidden,), jnp.float32),
        "cls_w": nrm(next(keys), (hidden, num_labels)),
        "cls_b": jnp.zeros((num_labels,), jnp.float32),
        "layers": [],
    }
    for _ in range(layers):
        p["layers"].append({
            "wq": nrm(next(keys), (hidden, hidden)), "bq": jnp.zeros((hidden,), jnp.float32),
            "wk": nrm(next(keys), (hidden, hidden)), "bk": jnp.zeros((hidden,), jnp.float32),
            "wv": nrm(next(keys), (hidden, hidden)), "bv": jnp.zeros((hidden,), jnp.float32),
            "wo": nrm(next(keys), (hidden, hidden)), "bo": jnp.zeros((hidden,), jnp.float32),
            "ln1_g": jnp.ones((hidden,), jnp.float32), "ln1_b": jnp.zeros((hidden,), jnp.float32),
            "w1": nrm(next(keys), (hidden, intermediate)), "b1": jnp.zeros((intermediate,), jnp.float32),
            "w2": nrm(next(keys), (intermediate, hidden)), "b2": jnp.zeros((hidden,), jnp.float32),
            "ln2_g": jnp.ones((hidden,), jnp.float32), "ln2_b": jnp.zeros((hidden,), jnp.float32),
        })
    return p


# ---------------------------------------------------------------------------
# CategorizerModel.forward equivalent
# ---------------------------------------------------------------------------

def categorizer_forward(params, input_ids, attention_mask, token_type_ids):
    B, S = input_ids.shape
    H = params["hidden"]
    nH = params["num_heads"]
    nLab = params["num_labels"]
    Dh = H // nH
    L = len(params["layers"])
    I = params["layers"][0]["w1"].shape[1]
    bf = jnp.bfloat16

    # --- BERT embeddings: table gathers + sum (plain-JAX glue) ---
    emb = (params["word_emb"][input_ids]
           + params["pos_emb"][jnp.arange(S)][None, :, :]
           + params["type_emb"][token_type_ids]).astype(jnp.float32)      # (B,S,H)

    # additive attention-mask bias, computed once (hoisted out of per-head loop)
    mask_bias = ((1.0 - attention_mask.astype(jnp.float32)) * jnp.float32(-1e9)
                 ).reshape(B, 1, S)

    layers = params["layers"]

    def stack(name):
        return jnp.stack([lyr[name] for lyr in layers])

    def stack_cat(names):
        return jnp.concatenate([jnp.stack([lyr[n] for lyr in layers])
                                for n in names], axis=-1)

    # stacked, bf16 weights (f32 biases / LN params)
    wqkv = stack_cat(("wq", "wk", "wv")).astype(bf)                       # (L,H,3H)
    bqkv = stack_cat(("bq", "bk", "bv")).reshape(L, 1, 3 * H)             # (L,1,3H)
    wo = stack("wo").astype(bf)                                           # (L,H,H)
    bo = stack("bo").reshape(L, 1, H)
    ln1_g = stack("ln1_g").reshape(L, 1, H)
    ln1_b = stack("ln1_b").reshape(L, 1, H)
    w1 = stack("w1").astype(bf)                                           # (L,H,I)
    b1 = stack("b1").reshape(L, 1, I)
    w2 = stack("w2").astype(bf)                                           # (L,I,H)
    b2 = stack("b2").reshape(L, 1, H)
    ln2_g = stack("ln2_g").reshape(L, 1, H)
    ln2_b = stack("ln2_b").reshape(L, 1, H)
    pool_w = params["pool_w"].astype(bf)
    pool_b = params["pool_b"].reshape(1, H)
    cls_w = params["cls_w"].astype(bf)
    cls_b = params["cls_b"].reshape(1, nLab)
    emb_g = params["emb_ln_g"].reshape(1, H)
    emb_b = params["emb_ln_b"].reshape(1, H)

    kernel = _make_fused_kernel(L, nH, Dh, H)

    def full(shape):
        # whole-array block, constant block index -> fetched once, VMEM-resident
        return pl.BlockSpec(shape, lambda b, _n=len(shape): (0,) * _n)

    logits = pl.pallas_call(
        kernel,
        out_shape=jax.ShapeDtypeStruct((B, 1, nLab), jnp.float32),
        grid=(B,),
        in_specs=[
            pl.BlockSpec((1, S, H), lambda b: (b, 0, 0)),   # embeddings
            pl.BlockSpec((1, 1, S), lambda b: (b, 0, 0)),   # mask bias
            full((1, H)), full((1, H)),                      # emb LN gamma/beta
            full((L, H, 3 * H)), full((L, 1, 3 * H)),        # fused QKV
            full((L, H, H)), full((L, 1, H)),                # attn output proj
            full((L, 1, H)), full((L, 1, H)),                # LN1
            full((L, H, I)), full((L, 1, I)),                # FFN up
            full((L, I, H)), full((L, 1, H)),                # FFN down
            full((L, 1, H)), full((L, 1, H)),                # LN2
            full((H, H)), full((1, H)),                      # pooler
            full((H, nLab)), full((1, nLab)),                # classifier
        ],
        out_specs=pl.BlockSpec((1, 1, nLab), lambda b: (b, 0, 0)),
        compiler_params=pltpu.CompilerParams(
            dimension_semantics=("parallel",)),              # v7x: one batch per TC
    )(emb, mask_bias, emb_g, emb_b,
      wqkv, bqkv, wo, bo, ln1_g, ln1_b,
      w1, b1, w2, b2, ln2_g, ln2_b,
      pool_w, pool_b, cls_w, cls_b)

    return logits.reshape(B, nLab)


# ---------------------------------------------------------------------------

if __name__ == "__main__":
    B, S = 2, 8
    key = jax.random.PRNGKey(0)
    k_p, k_ids = jax.random.split(key)

    params = make_params(k_p, vocab=100, max_pos=16, type_vocab=2,
                         hidden=32, heads=2, intermediate=64,
                         layers=2, num_labels=4)

    input_ids = jax.random.randint(k_ids, (B, S), 0, 100, dtype=jnp.int32)
    attention_mask = jnp.array([[1, 1, 1, 1, 1, 1, 0, 0],
                                [1, 1, 1, 1, 1, 1, 1, 1]], dtype=jnp.int32)
    token_type_ids = jnp.zeros((B, S), dtype=jnp.int32)

    logits = categorizer_forward(params, input_ids, attention_mask, token_type_ids)
    jax.block_until_ready(logits)
    assert logits.shape == (B, 4) and logits.dtype == jnp.float32
    print("KERNEL_OK")
</pallas_src>

<mosaic_0001>
module attributes {stable_mosaic.version = 11 : i64} {
  func.func @kernel(%arg0: i32, %arg1: memref<1x8x32xf32, #tpu.memory_space<vmem>>, %arg2: memref<1x1x8xf32, #tpu.memory_space<vmem>>, %arg3: memref<1x32xf32, #tpu.memory_space<vmem>>, %arg4: memref<1x32xf32, #tpu.memory_space<vmem>>, %arg5: memref<2x32x96xbf16, #tpu.memory_space<vmem>>, %arg6: memref<2x1x96xf32, #tpu.memory_space<vmem>>, %arg7: memref<2x32x32xbf16, #tpu.memory_space<vmem>>, %arg8: memref<2x1x32xf32, #tpu.memory_space<vmem>>, %arg9: memref<2x1x32xf32, #tpu.memory_space<vmem>>, %arg10: memref<2x1x32xf32, #tpu.memory_space<vmem>>, %arg11: memref<2x32x64xbf16, #tpu.memory_space<vmem>>, %arg12: memref<2x1x64xf32, #tpu.memory_space<vmem>>, %arg13: memref<2x64x32xbf16, #tpu.memory_space<vmem>>, %arg14: memref<2x1x32xf32, #tpu.memory_space<vmem>>, %arg15: memref<2x1x32xf32, #tpu.memory_space<vmem>>, %arg16: memref<2x1x32xf32, #tpu.memory_space<vmem>>, %arg17: memref<32x32xbf16, #tpu.memory_space<vmem>>, %arg18: memref<1x32xf32, #tpu.memory_space<vmem>>, %arg19: memref<32x4xbf16, #tpu.memory_space<vmem>>, %arg20: memref<1x4xf32, #tpu.memory_space<vmem>>, %arg21: memref<1x1x4xf32, #tpu.memory_space<vmem>>) attributes {dimension_semantics = [#tpu.dimension_semantics<parallel>], iteration_bounds = array<i64: 2>, scalar_prefetch = 0 : i64, scratch_operands = 0 : i64, tpu.core_type = #tpu.core_type<tc>, window_params = [{transform_indices = @transform_0, window_bounds = array<i64: 1, 8, 32>}, {transform_indices = @transform_1, window_bounds = array<i64: 1, 1, 8>}, {pipeline_mode = #tpu.pipeline_mode<synchronous>, transform_indices = @transform_2, window_bounds = array<i64: 1, 32>}, {pipeline_mode = #tpu.pipeline_mode<synchronous>, transform_indices = @transform_3, window_bounds = array<i64: 1, 32>}, {pipeline_mode = #tpu.pipeline_mode<synchronous>, transform_indices = @transform_4, window_bounds = array<i64: 2, 32, 96>}, {pipeline_mode = #tpu.pipeline_mode<synchronous>, transform_indices = @transform_5, window_bounds = array<i64: 2, 1, 96>}, {pipeline_mode = #tpu.pipeline_mode<synchronous>, transform_indices = @transform_6, window_bounds = array<i64: 2, 32, 32>}, {pipeline_mode = #tpu.pipeline_mode<synchronous>, transform_indices = @transform_7, window_bounds = array<i64: 2, 1, 32>}, {pipeline_mode = #tpu.pipeline_mode<synchronous>, transform_indices = @transform_8, window_bounds = array<i64: 2, 1, 32>}, {pipeline_mode = #tpu.pipeline_mode<synchronous>, transform_indices = @transform_9, window_bounds = array<i64: 2, 1, 32>}, {pipeline_mode = #tpu.pipeline_mode<synchronous>, transform_indices = @transform_10, window_bounds = array<i64: 2, 32, 64>}, {pipeline_mode = #tpu.pipeline_mode<synchronous>, transform_indices = @transform_11, window_bounds = array<i64: 2, 1, 64>}, {pipeline_mode = #tpu.pipeline_mode<synchronous>, transform_indices = @transform_12, window_bounds = array<i64: 2, 64, 32>}, {pipeline_mode = #tpu.pipeline_mode<synchronous>, transform_indices = @transform_13, window_bounds = array<i64: 2, 1, 32>}, {pipeline_mode = #tpu.pipeline_mode<synchronous>, transform_indices = @transform_14, window_bounds = array<i64: 2, 1, 32>}, {pipeline_mode = #tpu.pipeline_mode<synchronous>, transform_indices = @transform_15, window_bounds = array<i64: 2, 1, 32>}, {pipeline_mode = #tpu.pipeline_mode<synchronous>, transform_indices = @transform_16, window_bounds = array<i64: 32, 32>}, {pipeline_mode = #tpu.pipeline_mode<synchronous>, transform_indices = @transform_17, window_bounds = array<i64: 1, 32>}, {pipeline_mode = #tpu.pipeline_mode<synchronous>, transform_indices = @transform_18, window_bounds = array<i64: 32, 4>}, {pipeline_mode = #tpu.pipeline_mode<synchronous>, transform_indices = @transform_19, window_bounds = array<i64: 1, 4>}, {transform_indices = @transform_20, window_bounds = array<i64: 1, 1, 4>}]} {
    %c0 = arith.constant 0 : index
    %c0_0 = arith.constant 0 : index
    %c0_1 = arith.constant 0 : index
    %0 = vector.load %arg1[%c0, %c0_0, %c0_1] : memref<1x8x32xf32, #tpu.memory_space<vmem>>, vector<1x8x32xf32>
    %1 = vector.shape_cast %0 : vector<1x8x32xf32> to vector<8x32xf32>
    %c0_2 = arith.constant 0 : index
    %c0_3 = arith.constant 0 : index
    %2 = vector.load %arg3[%c0_2, %c0_3] : memref<1x32xf32, #tpu.memory_space<vmem>>, vector<1x32xf32>
    %c0_4 = arith.constant 0 : index
    %c0_5 = arith.constant 0 : index
    %3 = vector.load %arg4[%c0_4, %c0_5] : memref<1x32xf32, #tpu.memory_space<vmem>>, vector<1x32xf32>
    %cst = arith.constant dense<0.000000e+00> : vector<8xf32>
    %4 = vector.multi_reduction <add>, %1, %cst [1] : vector<8x32xf32> to vector<8xf32>
    %5 = vector.shape_cast %4 : vector<8xf32> to vector<8x1xf32>
    %cst_6 = arith.constant 3.200000e+01 : f32
    %6 = vector.broadcast %cst_6 : f32 to vector<8x1xf32>
    %7 = arith.divf %5, %6 : vector<8x1xf32>
    %8 = vector.broadcast %7 : vector<8x1xf32> to vector<8x32xf32>
    %9 = arith.subf %1, %8 : vector<8x32xf32>
    %10 = arith.mulf %9, %9 : vector<8x32xf32>
    %cst_7 = arith.constant dense<0.000000e+00> : vector<8xf32>
    %11 = vector.multi_reduction <add>, %10, %cst_7 [1] : vector<8x32xf32> to vector<8xf32>
    %12 = vector.shape_cast %11 : vector<8xf32> to vector<8x1xf32>
    %cst_8 = arith.constant 3.200000e+01 : f32
    %13 = vector.broadcast %cst_8 : f32 to vector<8x1xf32>
    %14 = arith.divf %12, %13 : vector<8x1xf32>
    %15 = vector.broadcast %7 : vector<8x1xf32> to vector<8x32xf32>
    %16 = arith.subf %1, %15 : vector<8x32xf32>
    %cst_9 = arith.constant 9.99999996E-13 : f32
    %17 = vector.broadcast %cst_9 : f32 to vector<8x1xf32>
    %18 = arith.addf %14, %17 : vector<8x1xf32>
    %19 = math.rsqrt %18 : vector<8x1xf32>
    %20 = vector.broadcast %19 : vector<8x1xf32> to vector<8x32xf32>
    %21 = arith.mulf %16, %20 : vector<8x32xf32>
    %22 = vector.broadcast %2 : vector<1x32xf32> to vector<8x32xf32>
    %23 = arith.mulf %21, %22 : vector<8x32xf32>
    %24 = vector.broadcast %3 : vector<1x32xf32> to vector<8x32xf32>
    %25 = arith.addf %23, %24 : vector<8x32xf32>
    %c0_10 = arith.constant 0 : index
    %c0_11 = arith.constant 0 : index
    %c0_12 = arith.constant 0 : index
    %26 = vector.load %arg2[%c0_10, %c0_11, %c0_12] : memref<1x1x8xf32, #tpu.memory_space<vmem>>, vector<1x1x8xf32>
    %27 = vector.shape_cast %26 : vector<1x1x8xf32> to vector<1x8xf32>
    %c0_13 = arith.constant 0 : index
    %c0_14 = arith.constant 0 : index
    %c0_15 = arith.constant 0 : index
    %28 = vector.load %arg5[%c0_13, %c0_14, %c0_15] : memref<2x32x96xbf16, #tpu.memory_space<vmem>>, vector<1x32x96xbf16>
    %29 = vector.shape_cast %28 : vector<1x32x96xbf16> to vector<32x96xbf16>
    %30 = arith.truncf %25 : vector<8x32xf32> to vector<8x32xbf16>
    %cst_16 = arith.constant dense<0.000000e+00> : vector<8x96xf32>
    %31 = tpu.matmul %30, %29, %cst_16 {dimension_numbers = #tpu.dot_dimension_numbers<[1], [0], [0], [1], [0, 0, 1, 1], [], []>} : vector<8x32xbf16>, vector<32x96xbf16>, vector<8x96xf32> -> vector<8x96xf32>
    %c0_17 = arith.constant 0 : index
    %c0_18 = arith.constant 0 : index
    %c0_19 = arith.constant 0 : index
    %32 = vector.load %arg6[%c0_17, %c0_18, %c0_19] : memref<2x1x96xf32, #tpu.memory_space<vmem>>, vector<1x1x96xf32>
    %33 = vector.shape_cast %32 : vector<1x1x96xf32> to vector<1x96xf32>
    %34 = vector.broadcast %33 : vector<1x96xf32> to vector<8x96xf32>
    %35 = arith.addf %31, %34 : vector<8x96xf32>
    %c0_20 = arith.constant 0 : index
    %c0_21 = arith.constant 0 : index
    %c0_22 = arith.constant 0 : index
    %36 = vector.load %arg7[%c0_20, %c0_21, %c0_22] : memref<2x32x32xbf16, #tpu.memory_space<vmem>>, vector<1x32x32xbf16>
    %37 = vector.shape_cast %36 : vector<1x32x32xbf16> to vector<32x32xbf16>
    %cst_23 = arith.constant 0.000000e+00 : f32
    %38 = vector.broadcast %cst_23 : f32 to vector<8x32xf32>
    %39 = vector.extract_strided_slice %35 {offsets = [0, 0], sizes = [8, 16], strides = [1, 1]} : vector<8x96xf32> to vector<8x16xf32>
    %40 = vector.extract_strided_slice %35 {offsets = [0, 32], sizes = [8, 16], strides = [1, 1]} : vector<8x96xf32> to vector<8x16xf32>
    %41 = vector.extract_strided_slice %35 {offsets = [0, 64], sizes = [8, 16], strides = [1, 1]} : vector<8x96xf32> to vector<8x16xf32>
    %42 = arith.truncf %39 : vector<8x16xf32> to vector<8x16xbf16>
    %43 = arith.truncf %40 : vector<8x16xf32> to vector<8x16xbf16>
    %cst_24 = arith.constant dense<0.000000e+00> : vector<8x8xf32>
    %44 = tpu.matmul %42, %43, %cst_24 {dimension_numbers = #tpu.dot_dimension_numbers<[1], [1], [0], [0], [0, 0, 1, 0], [], []>} : vector<8x16xbf16>, vector<8x16xbf16>, vector<8x8xf32> -> vector<8x8xf32>
    %cst_25 = arith.constant 2.500000e-01 : f32
    %45 = vector.broadcast %cst_25 : f32 to vector<8x8xf32>
    %46 = arith.mulf %44, %45 : vector<8x8xf32>
    %47 = vector.broadcast %27 : vector<1x8xf32> to vector<8x8xf32>
    %48 = arith.addf %46, %47 : vector<8x8xf32>
    %cst_26 = arith.constant dense<0xFF800000> : vector<8xf32>
    %49 = vector.multi_reduction <maximumf>, %48, %cst_26 [1] : vector<8x8xf32> to vector<8xf32>
    %50 = vector.shape_cast %49 : vector<8xf32> to vector<8x1xf32>
    %51 = vector.broadcast %50 : vector<8x1xf32> to vector<8x8xf32>
    %52 = arith.subf %48, %51 : vector<8x8xf32>
    %53 = math.exp %52 : vector<8x8xf32>
    %cst_27 = arith.constant dense<0.000000e+00> : vector<8xf32>
    %54 = vector.multi_reduction <add>, %53, %cst_27 [1] : vector<8x8xf32> to vector<8xf32>
    %55 = vector.shape_cast %54 : vector<8xf32> to vector<8x1xf32>
    %56 = tpu.reciprocal %55 {approx = true} : vector<8x1xf32> -> vector<8x1xf32>
    %57 = vector.broadcast %56 : vector<8x1xf32> to vector<8x8xf32>
    %58 = arith.mulf %53, %57 : vector<8x8xf32>
    %59 = arith.truncf %58 : vector<8x8xf32> to vector<8x8xbf16>
    %60 = arith.truncf %41 : vector<8x16xf32> to vector<8x16xbf16>
    %cst_28 = arith.constant dense<0.000000e+00> : vector<8x16xf32>
    %61 = tpu.matmul %59, %60, %cst_28 {dimension_numbers = #tpu.dot_dimension_numbers<[1], [0], [0], [1], [0, 0, 1, 1], [], []>} : vector<8x8xbf16>, vector<8x16xbf16>, vector<8x16xf32> -> vector<8x16xf32>
    %62 = vector.extract_strided_slice %37 {offsets = [0, 0], sizes = [16, 32], strides = [1, 1]} : vector<32x32xbf16> to vector<16x32xbf16>
    %63 = arith.truncf %61 : vector<8x16xf32> to vector<8x16xbf16>
    %cst_29 = arith.constant dense<0.000000e+00> : vector<8x32xf32>
    %64 = tpu.matmul %63, %62, %cst_29 {dimension_numbers = #tpu.dot_dimension_numbers<[1], [0], [0], [1], [0, 0, 1, 1], [], []>} : vector<8x16xbf16>, vector<16x32xbf16>, vector<8x32xf32> -> vector<8x32xf32>
    %65 = arith.addf %38, %64 : vector<8x32xf32>
    %66 = vector.extract_strided_slice %35 {offsets = [0, 16], sizes = [8, 16], strides = [1, 1]} : vector<8x96xf32> to vector<8x16xf32>
    %67 = vector.extract_strided_slice %35 {offsets = [0, 48], sizes = [8, 16], strides = [1, 1]} : vector<8x96xf32> to vector<8x16xf32>
    %68 = vector.extract_strided_slice %35 {offsets = [0, 80], sizes = [8, 16], strides = [1, 1]} : vector<8x96xf32> to vector<8x16xf32>
    %69 = arith.truncf %66 : vector<8x16xf32> to vector<8x16xbf16>
    %70 = arith.truncf %67 : vector<8x16xf32> to vector<8x16xbf16>
    %cst_30 = arith.constant dense<0.000000e+00> : vector<8x8xf32>
    %71 = tpu.matmul %69, %70, %cst_30 {dimension_numbers = #tpu.dot_dimension_numbers<[1], [1], [0], [0], [0, 0, 1, 0], [], []>} : vector<8x16xbf16>, vector<8x16xbf16>, vector<8x8xf32> -> vector<8x8xf32>
    %cst_31 = arith.constant 2.500000e-01 : f32
    %72 = vector.broadcast %cst_31 : f32 to vector<8x8xf32>
    %73 = arith.mulf %71, %72 : vector<8x8xf32>
    %74 = vector.broadcast %27 : vector<1x8xf32> to vector<8x8xf32>
    %75 = arith.addf %73, %74 : vector<8x8xf32>
    %cst_32 = arith.constant dense<0xFF800000> : vector<8xf32>
    %76 = vector.multi_reduction <maximumf>, %75, %cst_32 [1] : vector<8x8xf32> to vector<8xf32>
    %77 = vector.shape_cast %76 : vector<8xf32> to vector<8x1xf32>
    %78 = vector.broadcast %77 : vector<8x1xf32> to vector<8x8xf32>
    %79 = arith.subf %75, %78 : vector<8x8xf32>
    %80 = math.exp %79 : vector<8x8xf32>
    %cst_33 = arith.constant dense<0.000000e+00> : vector<8xf32>
    %81 = vector.multi_reduction <add>, %80, %cst_33 [1] : vector<8x8xf32> to vector<8xf32>
    %82 = vector.shape_cast %81 : vector<8xf32> to vector<8x1xf32>
    %83 = tpu.reciprocal %82 {approx = true} : vector<8x1xf32> -> vector<8x1xf32>
    %84 = vector.broadcast %83 : vector<8x1xf32> to vector<8x8xf32>
    %85 = arith.mulf %80, %84 : vector<8x8xf32>
    %86 = arith.truncf %85 : vector<8x8xf32> to vector<8x8xbf16>
    %87 = arith.truncf %68 : vector<8x16xf32> to vector<8x16xbf16>
    %cst_34 = arith.constant dense<0.000000e+00> : vector<8x16xf32>
    %88 = tpu.matmul %86, %87, %cst_34 {dimension_numbers = #tpu.dot_dimension_numbers<[1], [0], [0], [1], [0, 0, 1, 1], [], []>} : vector<8x8xbf16>, vector<8x16xbf16>, vector<8x16xf32> -> vector<8x16xf32>
    %89 = vector.extract_strided_slice %37 {offsets = [16, 0], sizes = [16, 32], strides = [1, 1]} : vector<32x32xbf16> to vector<16x32xbf16>
    %90 = arith.truncf %88 : vector<8x16xf32> to vector<8x16xbf16>
    %cst_35 = arith.constant dense<0.000000e+00> : vector<8x32xf32>
    %91 = tpu.matmul %90, %89, %cst_35 {dimension_numbers = #tpu.dot_dimension_numbers<[1], [0], [0], [1], [0, 0, 1, 1], [], []>} : vector<8x16xbf16>, vector<16x32xbf16>, vector<8x32xf32> -> vector<8x32xf32>
    %92 = arith.addf %65, %91 : vector<8x32xf32>
    %c0_36 = arith.constant 0 : index
    %c0_37 = arith.constant 0 : index
    %c0_38 = arith.constant 0 : index
    %93 = vector.load %arg8[%c0_36, %c0_37, %c0_38] : memref<2x1x32xf32, #tpu.memory_space<vmem>>, vector<1x1x32xf32>
    %94 = vector.shape_cast %93 : vector<1x1x32xf32> to vector<1x32xf32>
    %95 = vector.broadcast %94 : vector<1x32xf32> to vector<8x32xf32>
    %96 = arith.addf %92, %95 : vector<8x32xf32>
    %97 = arith.addf %96, %25 : vector<8x32xf32>
    %c0_39 = arith.constant 0 : index
    %c0_40 = arith.constant 0 : index
    %c0_41 = arith.constant 0 : index
    %98 = vector.load %arg9[%c0_39, %c0_40, %c0_41] : memref<2x1x32xf32, #tpu.memory_space<vmem>>, vector<1x1x32xf32>
    %99 = vector.shape_cast %98 : vector<1x1x32xf32> to vector<1x32xf32>
    %c0_42 = arith.constant 0 : index
    %c0_43 = arith.constant 0 : index
    %c0_44 = arith.constant 0 : index
    %100 = vector.load %arg10[%c0_42, %c0_43, %c0_44] : memref<2x1x32xf32, #tpu.memory_space<vmem>>, vector<1x1x32xf32>
    %101 = vector.shape_cast %100 : vector<1x1x32xf32> to vector<1x32xf32>
    %cst_45 = arith.constant dense<0.000000e+00> : vector<8xf32>
    %102 = vector.multi_reduction <add>, %97, %cst_45 [1] : vector<8x32xf32> to vector<8xf32>
    %103 = vector.shape_cast %102 : vector<8xf32> to vector<8x1xf32>
    %cst_46 = arith.constant 3.200000e+01 : f32
    %104 = vector.broadcast %cst_46 : f32 to vector<8x1xf32>
    %105 = arith.divf %103, %104 : vector<8x1xf32>
    %106 = vector.broadcast %105 : vector<8x1xf32> to vector<8x32xf32>
    %107 = arith.subf %97, %106 : vector<8x32xf32>
    %108 = arith.mulf %107, %107 : vector<8x32xf32>
    %cst_47 = arith.constant dense<0.000000e+00> : vector<8xf32>
    %109 = vector.multi_reduction <add>, %108, %cst_47 [1] : vector<8x32xf32> to vector<8xf32>
    %110 = vector.shape_cast %109 : vector<8xf32> to vector<8x1xf32>
    %cst_48 = arith.constant 3.200000e+01 : f32
    %111 = vector.broadcast %cst_48 : f32 to vector<8x1xf32>
    %112 = arith.divf %110, %111 : vector<8x1xf32>
    %113 = vector.broadcast %105 : vector<8x1xf32> to vector<8x32xf32>
    %114 = arith.subf %97, %113 : vector<8x32xf32>
    %cst_49 = arith.constant 9.99999996E-13 : f32
    %115 = vector.broadcast %cst_49 : f32 to vector<8x1xf32>
    %116 = arith.addf %112, %115 : vector<8x1xf32>
    %117 = math.rsqrt %116 : vector<8x1xf32>
    %118 = vector.broadcast %117 : vector<8x1xf32> to vector<8x32xf32>
    %119 = arith.mulf %114, %118 : vector<8x32xf32>
    %120 = vector.broadcast %99 : vector<1x32xf32> to vector<8x32xf32>
    %121 = arith.mulf %119, %120 : vector<8x32xf32>
    %122 = vector.broadcast %101 : vector<1x32xf32> to vector<8x32xf32>
    %123 = arith.addf %121, %122 : vector<8x32xf32>
    %c0_50 = arith.constant 0 : index
    %c0_51 = arith.constant 0 : index
    %c0_52 = arith.constant 0 : index
    %124 = vector.load %arg11[%c0_50, %c0_51, %c0_52] : memref<2x32x64xbf16, #tpu.memory_space<vmem>>, vector<1x32x64xbf16>
    %125 = vector.shape_cast %124 : vector<1x32x64xbf16> to vector<32x64xbf16>
    %126 = arith.truncf %123 : vector<8x32xf32> to vector<8x32xbf16>
    %cst_53 = arith.constant dense<0.000000e+00> : vector<8x64xf32>
    %127 = tpu.matmul %126, %125, %cst_53 {dimension_numbers = #tpu.dot_dimension_numbers<[1], [0], [0], [1], [0, 0, 1, 1], [], []>} : vector<8x32xbf16>, vector<32x64xbf16>, vector<8x64xf32> -> vector<8x64xf32>
    %c0_54 = arith.constant 0 : index
    %c0_55 = arith.constant 0 : index
    %c0_56 = arith.constant 0 : index
    %128 = vector.load %arg12[%c0_54, %c0_55, %c0_56] : memref<2x1x64xf32, #tpu.memory_space<vmem>>, vector<1x1x64xf32>
    %129 = vector.shape_cast %128 : vector<1x1x64xf32> to vector<1x64xf32>
    %130 = vector.broadcast %129 : vector<1x64xf32> to vector<8x64xf32>
    %131 = arith.addf %127, %130 : vector<8x64xf32>
    %cst_57 = arith.constant 5.000000e-01 : f32
    %132 = vector.broadcast %cst_57 : f32 to vector<8x64xf32>
    %133 = arith.mulf %132, %131 : vector<8x64xf32>
    %cst_58 = arith.constant 4.471500e-02 : f32
    %134 = vector.broadcast %cst_58 : f32 to vector<8x64xf32>
    %135 = arith.mulf %134, %131 : vector<8x64xf32>
    %136 = arith.mulf %135, %131 : vector<8x64xf32>
    %137 = arith.mulf %136, %131 : vector<8x64xf32>
    %138 = arith.addf %131, %137 : vector<8x64xf32>
    %cst_59 = arith.constant 0.797884583 : f32
    %139 = vector.broadcast %cst_59 : f32 to vector<8x64xf32>
    %140 = arith.mulf %139, %138 : vector<8x64xf32>
    %141 = math.tanh %140 : vector<8x64xf32>
    %cst_60 = arith.constant 1.000000e+00 : f32
    %142 = vector.broadcast %cst_60 : f32 to vector<8x64xf32>
    %143 = arith.addf %142, %141 : vector<8x64xf32>
    %144 = arith.mulf %133, %143 : vector<8x64xf32>
    %c0_61 = arith.constant 0 : index
    %c0_62 = arith.constant 0 : index
    %c0_63 = arith.constant 0 : index
    %145 = vector.load %arg13[%c0_61, %c0_62, %c0_63] : memref<2x64x32xbf16, #tpu.memory_space<vmem>>, vector<1x64x32xbf16>
    %146 = vector.shape_cast %145 : vector<1x64x32xbf16> to vector<64x32xbf16>
    %147 = arith.truncf %144 : vector<8x64xf32> to vector<8x64xbf16>
    %cst_64 = arith.constant dense<0.000000e+00> : vector<8x32xf32>
    %148 = tpu.matmul %147, %146, %cst_64 {dimension_numbers = #tpu.dot_dimension_numbers<[1], [0], [0], [1], [0, 0, 1, 1], [], []>} : vector<8x64xbf16>, vector<64x32xbf16>, vector<8x32xf32> -> vector<8x32xf32>
    %c0_65 = arith.constant 0 : index
    %c0_66 = arith.constant 0 : index
    %c0_67 = arith.constant 0 : index
    %149 = vector.load %arg14[%c0_65, %c0_66, %c0_67] : memref<2x1x32xf32, #tpu.memory_space<vmem>>, vector<1x1x32xf32>
    %150 = vector.shape_cast %149 : vector<1x1x32xf32> to vector<1x32xf32>
    %151 = vector.broadcast %150 : vector<1x32xf32> to vector<8x32xf32>
    %152 = arith.addf %148, %151 : vector<8x32xf32>
    %153 = arith.addf %152, %123 : vector<8x32xf32>
    %c0_68 = arith.constant 0 : index
    %c0_69 = arith.constant 0 : index
    %c0_70 = arith.constant 0 : index
    %154 = vector.load %arg15[%c0_68, %c0_69, %c0_70] : memref<2x1x32xf32, #tpu.memory_space<vmem>>, vector<1x1x32xf32>
    %155 = vector.shape_cast %154 : vector<1x1x32xf32> to vector<1x32xf32>
    %c0_71 = arith.constant 0 : index
    %c0_72 = arith.constant 0 : index
    %c0_73 = arith.constant 0 : index
    %156 = vector.load %arg16[%c0_71, %c0_72, %c0_73] : memref<2x1x32xf32, #tpu.memory_space<vmem>>, vector<1x1x32xf32>
    %157 = vector.shape_cast %156 : vector<1x1x32xf32> to vector<1x32xf32>
    %cst_74 = arith.constant dense<0.000000e+00> : vector<8xf32>
    %158 = vector.multi_reduction <add>, %153, %cst_74 [1] : vector<8x32xf32> to vector<8xf32>
    %159 = vector.shape_cast %158 : vector<8xf32> to vector<8x1xf32>
    %cst_75 = arith.constant 3.200000e+01 : f32
    %160 = vector.broadcast %cst_75 : f32 to vector<8x1xf32>
    %161 = arith.divf %159, %160 : vector<8x1xf32>
    %162 = vector.broadcast %161 : vector<8x1xf32> to vector<8x32xf32>
    %163 = arith.subf %153, %162 : vector<8x32xf32>
    %164 = arith.mulf %163, %163 : vector<8x32xf32>
    %cst_76 = arith.constant dense<0.000000e+00> : vector<8xf32>
    %165 = vector.multi_reduction <add>, %164, %cst_76 [1] : vector<8x32xf32> to vector<8xf32>
    %166 = vector.shape_cast %165 : vector<8xf32> to vector<8x1xf32>
    %cst_77 = arith.constant 3.200000e+01 : f32
    %167 = vector.broadcast %cst_77 : f32 to vector<8x1xf32>
    %168 = arith.divf %166, %167 : vector<8x1xf32>
    %169 = vector.broadcast %161 : vector<8x1xf32> to vector<8x32xf32>
    %170 = arith.subf %153, %169 : vector<8x32xf32>
    %cst_78 = arith.constant 9.99999996E-13 : f32
    %171 = vector.broadcast %cst_78 : f32 to vector<8x1xf32>
    %172 = arith.addf %168, %171 : vector<8x1xf32>
    %173 = math.rsqrt %172 : vector<8x1xf32>
    %174 = vector.broadcast %173 : vector<8x1xf32> to vector<8x32xf32>
    %175 = arith.mulf %170, %174 : vector<8x32xf32>
    %176 = vector.broadcast %155 : vector<1x32xf32> to vector<8x32xf32>
    %177 = arith.mulf %175, %176 : vector<8x32xf32>
    %178 = vector.broadcast %157 : vector<1x32xf32> to vector<8x32xf32>
    %179 = arith.addf %177, %178 : vector<8x32xf32>
    %c1 = arith.constant 1 : index
    %c0_79 = arith.constant 0 : index
    %c0_80 = arith.constant 0 : index
    %180 = vector.load %arg5[%c1, %c0_79, %c0_80] : memref<2x32x96xbf16, #tpu.memory_space<vmem>>, vector<1x32x96xbf16>
    %181 = vector.shape_cast %180 : vector<1x32x96xbf16> to vector<32x96xbf16>
    %182 = arith.truncf %179 : vector<8x32xf32> to vector<8x32xbf16>
    %cst_81 = arith.constant dense<0.000000e+00> : vector<8x96xf32>
    %183 = tpu.matmul %182, %181, %cst_81 {dimension_numbers = #tpu.dot_dimension_numbers<[1], [0], [0], [1], [0, 0, 1, 1], [], []>} : vector<8x32xbf16>, vector<32x96xbf16>, vector<8x96xf32> -> vector<8x96xf32>
    %c1_82 = arith.constant 1 : index
    %c0_83 = arith.constant 0 : index
    %c0_84 = arith.constant 0 : index
    %184 = vector.load %arg6[%c1_82, %c0_83, %c0_84] : memref<2x1x96xf32, #tpu.memory_space<vmem>>, vector<1x1x96xf32>
    %185 = vector.shape_cast %184 : vector<1x1x96xf32> to vector<1x96xf32>
    %186 = vector.broadcast %185 : vector<1x96xf32> to vector<8x96xf32>
    %187 = arith.addf %183, %186 : vector<8x96xf32>
    %c1_85 = arith.constant 1 : index
    %c0_86 = arith.constant 0 : index
    %c0_87 = arith.constant 0 : index
    %188 = vector.load %arg7[%c1_85, %c0_86, %c0_87] : memref<2x32x32xbf16, #tpu.memory_space<vmem>>, vector<1x32x32xbf16>
    %189 = vector.shape_cast %188 : vector<1x32x32xbf16> to vector<32x32xbf16>
    %cst_88 = arith.constant 0.000000e+00 : f32
    %190 = vector.broadcast %cst_88 : f32 to vector<8x32xf32>
    %191 = vector.extract_strided_slice %187 {offsets = [0, 0], sizes = [8, 16], strides = [1, 1]} : vector<8x96xf32> to vector<8x16xf32>
    %192 = vector.extract_strided_slice %187 {offsets = [0, 32], sizes = [8, 16], strides = [1, 1]} : vector<8x96xf32> to vector<8x16xf32>
    %193 = vector.extract_strided_slice %187 {offsets = [0, 64], sizes = [8, 16], strides = [1, 1]} : vector<8x96xf32> to vector<8x16xf32>
    %194 = arith.truncf %191 : vector<8x16xf32> to vector<8x16xbf16>
    %195 = arith.truncf %192 : vector<8x16xf32> to vector<8x16xbf16>
    %cst_89 = arith.constant dense<0.000000e+00> : vector<8x8xf32>
    %196 = tpu.matmul %194, %195, %cst_89 {dimension_numbers = #tpu.dot_dimension_numbers<[1], [1], [0], [0], [0, 0, 1, 0], [], []>} : vector<8x16xbf16>, vector<8x16xbf16>, vector<8x8xf32> -> vector<8x8xf32>
    %cst_90 = arith.constant 2.500000e-01 : f32
    %197 = vector.broadcast %cst_90 : f32 to vector<8x8xf32>
    %198 = arith.mulf %196, %197 : vector<8x8xf32>
    %199 = vector.broadcast %27 : vector<1x8xf32> to vector<8x8xf32>
    %200 = arith.addf %198, %199 : vector<8x8xf32>
    %cst_91 = arith.constant dense<0xFF800000> : vector<8xf32>
    %201 = vector.multi_reduction <maximumf>, %200, %cst_91 [1] : vector<8x8xf32> to vector<8xf32>
    %202 = vector.shape_cast %201 : vector<8xf32> to vector<8x1xf32>
    %203 = vector.broadcast %202 : vector<8x1xf32> to vector<8x8xf32>
    %204 = arith.subf %200, %203 : vector<8x8xf32>
    %205 = math.exp %204 : vector<8x8xf32>
    %cst_92 = arith.constant dense<0.000000e+00> : vector<8xf32>
    %206 = vector.multi_reduction <add>, %205, %cst_92 [1] : vector<8x8xf32> to vector<8xf32>
    %207 = vector.shape_cast %206 : vector<8xf32> to vector<8x1xf32>
    %208 = tpu.reciprocal %207 {approx = true} : vector<8x1xf32> -> vector<8x1xf32>
    %209 = vector.broadcast %208 : vector<8x1xf32> to vector<8x8xf32>
    %210 = arith.mulf %205, %209 : vector<8x8xf32>
    %211 = arith.truncf %210 : vector<8x8xf32> to vector<8x8xbf16>
    %212 = arith.truncf %193 : vector<8x16xf32> to vector<8x16xbf16>
    %cst_93 = arith.constant dense<0.000000e+00> : vector<8x16xf32>
    %213 = tpu.matmul %211, %212, %cst_93 {dimension_numbers = #tpu.dot_dimension_numbers<[1], [0], [0], [1], [0, 0, 1, 1], [], []>} : vector<8x8xbf16>, vector<8x16xbf16>, vector<8x16xf32> -> vector<8x16xf32>
    %214 = vector.extract_strided_slice %189 {offsets = [0, 0], sizes = [16, 32], strides = [1, 1]} : vector<32x32xbf16> to vector<16x32xbf16>
    %215 = arith.truncf %213 : vector<8x16xf32> to vector<8x16xbf16>
    %cst_94 = arith.constant dense<0.000000e+00> : vector<8x32xf32>
    %216 = tpu.matmul %215, %214, %cst_94 {dimension_numbers = #tpu.dot_dimension_numbers<[1], [0], [0], [1], [0, 0, 1, 1], [], []>} : vector<8x16xbf16>, vector<16x32xbf16>, vector<8x32xf32> -> vector<8x32xf32>
    %217 = arith.addf %190, %216 : vector<8x32xf32>
    %218 = vector.extract_strided_slice %187 {offsets = [0, 16], sizes = [8, 16], strides = [1, 1]} : vector<8x96xf32> to vector<8x16xf32>
    %219 = vector.extract_strided_slice %187 {offsets = [0, 48], sizes = [8, 16], strides = [1, 1]} : vector<8x96xf32> to vector<8x16xf32>
    %220 = vector.extract_strided_slice %187 {offsets = [0, 80], sizes = [8, 16], strides = [1, 1]} : vector<8x96xf32> to vector<8x16xf32>
    %221 = arith.truncf %218 : vector<8x16xf32> to vector<8x16xbf16>
    %222 = arith.truncf %219 : vector<8x16xf32> to vector<8x16xbf16>
    %cst_95 = arith.constant dense<0.000000e+00> : vector<8x8xf32>
    %223 = tpu.matmul %221, %222, %cst_95 {dimension_numbers = #tpu.dot_dimension_numbers<[1], [1], [0], [0], [0, 0, 1, 0], [], []>} : vector<8x16xbf16>, vector<8x16xbf16>, vector<8x8xf32> -> vector<8x8xf32>
    %cst_96 = arith.constant 2.500000e-01 : f32
    %224 = vector.broadcast %cst_96 : f32 to vector<8x8xf32>
    %225 = arith.mulf %223, %224 : vector<8x8xf32>
    %226 = vector.broadcast %27 : vector<1x8xf32> to vector<8x8xf32>
    %227 = arith.addf %225, %226 : vector<8x8xf32>
    %cst_97 = arith.constant dense<0xFF800000> : vector<8xf32>
    %228 = vector.multi_reduction <maximumf>, %227, %cst_97 [1] : vector<8x8xf32> to vector<8xf32>
    %229 = vector.shape_cast %228 : vector<8xf32> to vector<8x1xf32>
    %230 = vector.broadcast %229 : vector<8x1xf32> to vector<8x8xf32>
    %231 = arith.subf %227, %230 : vector<8x8xf32>
    %232 = math.exp %231 : vector<8x8xf32>
    %cst_98 = arith.constant dense<0.000000e+00> : vector<8xf32>
    %233 = vector.multi_reduction <add>, %232, %cst_98 [1] : vector<8x8xf32> to vector<8xf32>
    %234 = vector.shape_cast %233 : vector<8xf32> to vector<8x1xf32>
    %235 = tpu.reciprocal %234 {approx = true} : vector<8x1xf32> -> vector<8x1xf32>
    %236 = vector.broadcast %235 : vector<8x1xf32> to vector<8x8xf32>
    %237 = arith.mulf %232, %236 : vector<8x8xf32>
    %238 = arith.truncf %237 : vector<8x8xf32> to vector<8x8xbf16>
    %239 = arith.truncf %220 : vector<8x16xf32> to vector<8x16xbf16>
    %cst_99 = arith.constant dense<0.000000e+00> : vector<8x16xf32>
    %240 = tpu.matmul %238, %239, %cst_99 {dimension_numbers = #tpu.dot_dimension_numbers<[1], [0], [0], [1], [0, 0, 1, 1], [], []>} : vector<8x8xbf16>, vector<8x16xbf16>, vector<8x16xf32> -> vector<8x16xf32>
    %241 = vector.extract_strided_slice %189 {offsets = [16, 0], sizes = [16, 32], strides = [1, 1]} : vector<32x32xbf16> to vector<16x32xbf16>
    %242 = arith.truncf %240 : vector<8x16xf32> to vector<8x16xbf16>
    %cst_100 = arith.constant dense<0.000000e+00> : vector<8x32xf32>
    %243 = tpu.matmul %242, %241, %cst_100 {dimension_numbers = #tpu.dot_dimension_numbers<[1], [0], [0], [1], [0, 0, 1, 1], [], []>} : vector<8x16xbf16>, vector<16x32xbf16>, vector<8x32xf32> -> vector<8x32xf32>
    %244 = arith.addf %217, %243 : vector<8x32xf32>
    %c1_101 = arith.constant 1 : index
    %c0_102 = arith.constant 0 : index
    %c0_103 = arith.constant 0 : index
    %245 = vector.load %arg8[%c1_101, %c0_102, %c0_103] : memref<2x1x32xf32, #tpu.memory_space<vmem>>, vector<1x1x32xf32>
    %246 = vector.shape_cast %245 : vector<1x1x32xf32> to vector<1x32xf32>
    %247 = vector.broadcast %246 : vector<1x32xf32> to vector<8x32xf32>
    %248 = arith.addf %244, %247 : vector<8x32xf32>
    %249 = arith.addf %248, %179 : vector<8x32xf32>
    %c1_104 = arith.constant 1 : index
    %c0_105 = arith.constant 0 : index
    %c0_106 = arith.constant 0 : index
    %250 = vector.load %arg9[%c1_104, %c0_105, %c0_106] : memref<2x1x32xf32, #tpu.memory_space<vmem>>, vector<1x1x32xf32>
    %251 = vector.shape_cast %250 : vector<1x1x32xf32> to vector<1x32xf32>
    %c1_107 = arith.constant 1 : index
    %c0_108 = arith.constant 0 : index
    %c0_109 = arith.constant 0 : index
    %252 = vector.load %arg10[%c1_107, %c0_108, %c0_109] : memref<2x1x32xf32, #tpu.memory_space<vmem>>, vector<1x1x32xf32>
    %253 = vector.shape_cast %252 : vector<1x1x32xf32> to vector<1x32xf32>
    %cst_110 = arith.constant dense<0.000000e+00> : vector<8xf32>
    %254 = vector.multi_reduction <add>, %249, %cst_110 [1] : vector<8x32xf32> to vector<8xf32>
    %255 = vector.shape_cast %254 : vector<8xf32> to vector<8x1xf32>
    %cst_111 = arith.constant 3.200000e+01 : f32
    %256 = vector.broadcast %cst_111 : f32 to vector<8x1xf32>
    %257 = arith.divf %255, %256 : vector<8x1xf32>
    %258 = vector.broadcast %257 : vector<8x1xf32> to vector<8x32xf32>
    %259 = arith.subf %249, %258 : vector<8x32xf32>
    %260 = arith.mulf %259, %259 : vector<8x32xf32>
    %cst_112 = arith.constant dense<0.000000e+00> : vector<8xf32>
    %261 = vector.multi_reduction <add>, %260, %cst_112 [1] : vector<8x32xf32> to vector<8xf32>
    %262 = vector.shape_cast %261 : vector<8xf32> to vector<8x1xf32>
    %cst_113 = arith.constant 3.200000e+01 : f32
    %263 = vector.broadcast %cst_113 : f32 to vector<8x1xf32>
    %264 = arith.divf %262, %263 : vector<8x1xf32>
    %265 = vector.broadcast %257 : vector<8x1xf32> to vector<8x32xf32>
    %266 = arith.subf %249, %265 : vector<8x32xf32>
    %cst_114 = arith.constant 9.99999996E-13 : f32
    %267 = vector.broadcast %cst_114 : f32 to vector<8x1xf32>
    %268 = arith.addf %264, %267 : vector<8x1xf32>
    %269 = math.rsqrt %268 : vector<8x1xf32>
    %270 = vector.broadcast %269 : vector<8x1xf32> to vector<8x32xf32>
    %271 = arith.mulf %266, %270 : vector<8x32xf32>
    %272 = vector.broadcast %251 : vector<1x32xf32> to vector<8x32xf32>
    %273 = arith.mulf %271, %272 : vector<8x32xf32>
    %274 = vector.broadcast %253 : vector<1x32xf32> to vector<8x32xf32>
    %275 = arith.addf %273, %274 : vector<8x32xf32>
    %c1_115 = arith.constant 1 : index
    %c0_116 = arith.constant 0 : index
    %c0_117 = arith.constant 0 : index
    %276 = vector.load %arg11[%c1_115, %c0_116, %c0_117] : memref<2x32x64xbf16, #tpu.memory_space<vmem>>, vector<1x32x64xbf16>
    %277 = vector.shape_cast %276 : vector<1x32x64xbf16> to vector<32x64xbf16>
    %278 = arith.truncf %275 : vector<8x32xf32> to vector<8x32xbf16>
    %cst_118 = arith.constant dense<0.000000e+00> : vector<8x64xf32>
    %279 = tpu.matmul %278, %277, %cst_118 {dimension_numbers = #tpu.dot_dimension_numbers<[1], [0], [0], [1], [0, 0, 1, 1], [], []>} : vector<8x32xbf16>, vector<32x64xbf16>, vector<8x64xf32> -> vector<8x64xf32>
    %c1_119 = arith.constant 1 : index
    %c0_120 = arith.constant 0 : index
    %c0_121 = arith.constant 0 : index
    %280 = vector.load %arg12[%c1_119, %c0_120, %c0_121] : memref<2x1x64xf32, #tpu.memory_space<vmem>>, vector<1x1x64xf32>
    %281 = vector.shape_cast %280 : vector<1x1x64xf32> to vector<1x64xf32>
    %282 = vector.broadcast %281 : vector<1x64xf32> to vector<8x64xf32>
    %283 = arith.addf %279, %282 : vector<8x64xf32>
    %cst_122 = arith.constant 5.000000e-01 : f32
    %284 = vector.broadcast %cst_122 : f32 to vector<8x64xf32>
    %285 = arith.mulf %284, %283 : vector<8x64xf32>
    %cst_123 = arith.constant 4.471500e-02 : f32
    %286 = vector.broadcast %cst_123 : f32 to vector<8x64xf32>
    %287 = arith.mulf %286, %283 : vector<8x64xf32>
    %288 = arith.mulf %287, %283 : vector<8x64xf32>
    %289 = arith.mulf %288, %283 : vector<8x64xf32>
    %290 = arith.addf %283, %289 : vector<8x64xf32>
    %cst_124 = arith.constant 0.797884583 : f32
    %291 = vector.broadcast %cst_124 : f32 to vector<8x64xf32>
    %292 = arith.mulf %291, %290 : vector<8x64xf32>
    %293 = math.tanh %292 : vector<8x64xf32>
    %cst_125 = arith.constant 1.000000e+00 : f32
    %294 = vector.broadcast %cst_125 : f32 to vector<8x64xf32>
    %295 = arith.addf %294, %293 : vector<8x64xf32>
    %296 = arith.mulf %285, %295 : vector<8x64xf32>
    %c1_126 = arith.constant 1 : index
    %c0_127 = arith.constant 0 : index
    %c0_128 = arith.constant 0 : index
    %297 = vector.load %arg13[%c1_126, %c0_127, %c0_128] : memref<2x64x32xbf16, #tpu.memory_space<vmem>>, vector<1x64x32xbf16>
    %298 = vector.shape_cast %297 : vector<1x64x32xbf16> to vector<64x32xbf16>
    %299 = arith.truncf %296 : vector<8x64xf32> to vector<8x64xbf16>
    %cst_129 = arith.constant dense<0.000000e+00> : vector<8x32xf32>
    %300 = tpu.matmul %299, %298, %cst_129 {dimension_numbers = #tpu.dot_dimension_numbers<[1], [0], [0], [1], [0, 0, 1, 1], [], []>} : vector<8x64xbf16>, vector<64x32xbf16>, vector<8x32xf32> -> vector<8x32xf32>
    %c1_130 = arith.constant 1 : index
    %c0_131 = arith.constant 0 : index
    %c0_132 = arith.constant 0 : index
    %301 = vector.load %arg14[%c1_130, %c0_131, %c0_132] : memref<2x1x32xf32, #tpu.memory_space<vmem>>, vector<1x1x32xf32>
    %302 = vector.shape_cast %301 : vector<1x1x32xf32> to vector<1x32xf32>
    %303 = vector.broadcast %302 : vector<1x32xf32> to vector<8x32xf32>
    %304 = arith.addf %300, %303 : vector<8x32xf32>
    %305 = arith.addf %304, %275 : vector<8x32xf32>
    %c1_133 = arith.constant 1 : index
    %c0_134 = arith.constant 0 : index
    %c0_135 = arith.constant 0 : index
    %306 = vector.load %arg15[%c1_133, %c0_134, %c0_135] : memref<2x1x32xf32, #tpu.memory_space<vmem>>, vector<1x1x32xf32>
    %307 = vector.shape_cast %306 : vector<1x1x32xf32> to vector<1x32xf32>
    %c1_136 = arith.constant 1 : index
    %c0_137 = arith.constant 0 : index
    %c0_138 = arith.constant 0 : index
    %308 = vector.load %arg16[%c1_136, %c0_137, %c0_138] : memref<2x1x32xf32, #tpu.memory_space<vmem>>, vector<1x1x32xf32>
    %309 = vector.shape_cast %308 : vector<1x1x32xf32> to vector<1x32xf32>
    %cst_139 = arith.constant dense<0.000000e+00> : vector<8xf32>
    %310 = vector.multi_reduction <add>, %305, %cst_139 [1] : vector<8x32xf32> to vector<8xf32>
    %311 = vector.shape_cast %310 : vector<8xf32> to vector<8x1xf32>
    %cst_140 = arith.constant 3.200000e+01 : f32
    %312 = vector.broadcast %cst_140 : f32 to vector<8x1xf32>
    %313 = arith.divf %311, %312 : vector<8x1xf32>
    %314 = vector.broadcast %313 : vector<8x1xf32> to vector<8x32xf32>
    %315 = arith.subf %305, %314 : vector<8x32xf32>
    %316 = arith.mulf %315, %315 : vector<8x32xf32>
    %cst_141 = arith.constant dense<0.000000e+00> : vector<8xf32>
    %317 = vector.multi_reduction <add>, %316, %cst_141 [1] : vector<8x32xf32> to vector<8xf32>
    %318 = vector.shape_cast %317 : vector<8xf32> to vector<8x1xf32>
    %cst_142 = arith.constant 3.200000e+01 : f32
    %319 = vector.broadcast %cst_142 : f32 to vector<8x1xf32>
    %320 = arith.divf %318, %319 : vector<8x1xf32>
    %321 = vector.broadcast %313 : vector<8x1xf32> to vector<8x32xf32>
    %322 = arith.subf %305, %321 : vector<8x32xf32>
    %cst_143 = arith.constant 9.99999996E-13 : f32
    %323 = vector.broadcast %cst_143 : f32 to vector<8x1xf32>
    %324 = arith.addf %320, %323 : vector<8x1xf32>
    %325 = math.rsqrt %324 : vector<8x1xf32>
    %326 = vector.broadcast %325 : vector<8x1xf32> to vector<8x32xf32>
    %327 = arith.mulf %322, %326 : vector<8x32xf32>
    %328 = vector.broadcast %307 : vector<1x32xf32> to vector<8x32xf32>
    %329 = arith.mulf %327, %328 : vector<8x32xf32>
    %330 = vector.broadcast %309 : vector<1x32xf32> to vector<8x32xf32>
    %331 = arith.addf %329, %330 : vector<8x32xf32>
    %332 = vector.extract_strided_slice %331 {offsets = [0, 0], sizes = [1, 32], strides = [1, 1]} : vector<8x32xf32> to vector<1x32xf32>
    %c0_144 = arith.constant 0 : index
    %c0_145 = arith.constant 0 : index
    %333 = vector.load %arg17[%c0_144, %c0_145] : memref<32x32xbf16, #tpu.memory_space<vmem>>, vector<32x32xbf16>
    %334 = arith.truncf %332 : vector<1x32xf32> to vector<1x32xbf16>
    %cst_146 = arith.constant dense<0.000000e+00> : vector<1x32xf32>
    %335 = tpu.matmul %334, %333, %cst_146 {dimension_numbers = #tpu.dot_dimension_numbers<[1], [0], [0], [1], [0, 0, 1, 1], [], []>} : vector<1x32xbf16>, vector<32x32xbf16>, vector<1x32xf32> -> vector<1x32xf32>
    %c0_147 = arith.constant 0 : index
    %c0_148 = arith.constant 0 : index
    %336 = vector.load %arg18[%c0_147, %c0_148] : memref<1x32xf32, #tpu.memory_space<vmem>>, vector<1x32xf32>
    %337 = arith.addf %335, %336 : vector<1x32xf32>
    %338 = math.tanh %337 : vector<1x32xf32>
    %c0_149 = arith.constant 0 : index
    %c0_150 = arith.constant 0 : index
    %339 = vector.load %arg19[%c0_149, %c0_150] : memref<32x4xbf16, #tpu.memory_space<vmem>>, vector<32x4xbf16>
    %340 = arith.truncf %338 : vector<1x32xf32> to vector<1x32xbf16>
    %cst_151 = arith.constant dense<0.000000e+00> : vector<1x4xf32>
    %341 = tpu.matmul %340, %339, %cst_151 {dimension_numbers = #tpu.dot_dimension_numbers<[1], [0], [0], [1], [0, 0, 1, 1], [], []>} : vector<1x32xbf16>, vector<32x4xbf16>, vector<1x4xf32> -> vector<1x4xf32>
    %c0_152 = arith.constant 0 : index
    %c0_153 = arith.constant 0 : index
    %342 = vector.load %arg20[%c0_152, %c0_153] : memref<1x4xf32, #tpu.memory_space<vmem>>, vector<1x4xf32>
    %343 = arith.addf %341, %342 : vector<1x4xf32>
    %c0_154 = arith.constant 0 : index
    %c0_155 = arith.constant 0 : index
    %c0_156 = arith.constant 0 : index
    %344 = vector.load %arg21[%c0_154, %c0_155, %c0_156] : memref<1x1x4xf32, #tpu.memory_space<vmem>>, vector<1x1x4xf32>
    %345 = vector.shape_cast %344 : vector<1x1x4xf32> to vector<1x4xf32>
    %346 = vector.shape_cast %343 : vector<1x4xf32> to vector<1x1x4xf32>
    tpu.vector_store %arg21[%c0_154, %c0_155, %c0_156], %346 {strides = array<i32>} : memref<1x1x4xf32, #tpu.memory_space<vmem>>, vector<1x1x4xf32>,
    return
  }
  func.func @transform_0(%arg0: i32) -> (i32, i32, i32) {
    %c0_i32 = arith.constant 0 : i32
    %c0_i32_0 = arith.constant 0 : i32
    %c0_i32_1 = arith.constant 0 : i32
    return %arg0, %c0_i32, %c0_i32_0 : i32, i32, i32
  }
  func.func @transform_1(%arg0: i32) -> (i32, i32, i32) {
    %c0_i32 = arith.constant 0 : i32
    %c0_i32_0 = arith.constant 0 : i32
    %c0_i32_1 = arith.constant 0 : i32
    return %arg0, %c0_i32, %c0_i32_0 : i32, i32, i32
  }
  func.func @transform_2(%arg0: i32) -> (i32, i32) {
    %c0_i32 = arith.constant 0 : i32
    %c0_i32_0 = arith.constant 0 : i32
    %c0_i32_1 = arith.constant 0 : i32
    return %c0_i32, %c0_i32_0 : i32, i32
  }
  func.func @transform_3(%arg0: i32) -> (i32, i32) {
    %c0_i32 = arith.constant 0 : i32
    %c0_i32_0 = arith.constant 0 : i32
    %c0_i32_1 = arith.constant 0 : i32
    return %c0_i32, %c0_i32_0 : i32, i32
  }
  func.func @transform_4(%arg0: i32) -> (i32, i32, i32) {
    %c0_i32 = arith.constant 0 : i32
    %c0_i32_0 = arith.constant 0 : i32
    %c0_i32_1 = arith.constant 0 : i32
    %c0_i32_2 = arith.constant 0 : i32
    return %c0_i32, %c0_i32_0, %c0_i32_1 : i32, i32, i32
  }
  func.func @transform_5(%arg0: i32) -> (i32, i32, i32) {
    %c0_i32 = arith.constant 0 : i32
    %c0_i32_0 = arith.constant 0 : i32
    %c0_i32_1 = arith.constant 0 : i32
    %c0_i32_2 = arith.constant 0 : i32
    return %c0_i32, %c0_i32_0, %c0_i32_1 : i32, i32, i32
  }
  func.func @transform_6(%arg0: i32) -> (i32, i32, i32) {
    %c0_i32 = arith.constant 0 : i32
    %c0_i32_0 = arith.constant 0 : i32
    %c0_i32_1 = arith.constant 0 : i32
    %c0_i32_2 = arith.constant 0 : i32
    return %c0_i32, %c0_i32_0, %c0_i32_1 : i32, i32, i32
  }
  func.func @transform_7(%arg0: i32) -> (i32, i32, i32) {
    %c0_i32 = arith.constant 0 : i32
    %c0_i32_0 = arith.constant 0 : i32
    %c0_i32_1 = arith.constant 0 : i32
    %c0_i32_2 = arith.constant 0 : i32
    return %c0_i32, %c0_i32_0, %c0_i32_1 : i32, i32, i32
  }
  func.func @transform_8(%arg0: i32) -> (i32, i32, i32) {
    %c0_i32 = arith.constant 0 : i32
    %c0_i32_0 = arith.constant 0 : i32
    %c0_i32_1 = arith.constant 0 : i32
    %c0_i32_2 = arith.constant 0 : i32
    return %c0_i32, %c0_i32_0, %c0_i32_1 : i32, i32, i32
  }
  func.func @transform_9(%arg0: i32) -> (i32, i32, i32) {
    %c0_i32 = arith.constant 0 : i32
    %c0_i32_0 = arith.constant 0 : i32
    %c0_i32_1 = arith.constant 0 : i32
    %c0_i32_2 = arith.constant 0 : i32
    return %c0_i32, %c0_i32_0, %c0_i32_1 : i32, i32, i32
  }
  func.func @transform_10(%arg0: i32) -> (i32, i32, i32) {
    %c0_i32 = arith.constant 0 : i32
    %c0_i32_0 = arith.constant 0 : i32
    %c0_i32_1 = arith.constant 0 : i32
    %c0_i32_2 = arith.constant 0 : i32
    return %c0_i32, %c0_i32_0, %c0_i32_1 : i32, i32, i32
  }
  func.func @transform_11(%arg0: i32) -> (i32, i32, i32) {
    %c0_i32 = arith.constant 0 : i32
    %c0_i32_0 = arith.constant 0 : i32
    %c0_i32_1 = arith.constant 0 : i32
    %c0_i32_2 = arith.constant 0 : i32
    return %c0_i32, %c0_i32_0, %c0_i32_1 : i32, i32, i32
  }
  func.func @transform_12(%arg0: i32) -> (i32, i32, i32) {
    %c0_i32 = arith.constant 0 : i32
    %c0_i32_0 = arith.constant 0 : i32
    %c0_i32_1 = arith.constant 0 : i32
    %c0_i32_2 = arith.constant 0 : i32
    return %c0_i32, %c0_i32_0, %c0_i32_1 : i32, i32, i32
  }
  func.func @transform_13(%arg0: i32) -> (i32, i32, i32) {
    %c0_i32 = arith.constant 0 : i32
    %c0_i32_0 = arith.constant 0 : i32
    %c0_i32_1 = arith.constant 0 : i32
    %c0_i32_2 = arith.constant 0 : i32
    return %c0_i32, %c0_i32_0, %c0_i32_1 : i32, i32, i32
  }
  func.func @transform_14(%arg0: i32) -> (i32, i32, i32) {
    %c0_i32 = arith.constant 0 : i32
    %c0_i32_0 = arith.constant 0 : i32
    %c0_i32_1 = arith.constant 0 : i32
    %c0_i32_2 = arith.constant 0 : i32
    return %c0_i32, %c0_i32_0, %c0_i32_1 : i32, i32, i32
  }
  func.func @transform_15(%arg0: i32) -> (i32, i32, i32) {
    %c0_i32 = arith.constant 0 : i32
    %c0_i32_0 = arith.constant 0 : i32
    %c0_i32_1 = arith.constant 0 : i32
    %c0_i32_2 = arith.constant 0 : i32
    return %c0_i32, %c0_i32_0, %c0_i32_1 : i32, i32, i32
  }
  func.func @transform_16(%arg0: i32) -> (i32, i32) {
    %c0_i32 = arith.constant 0 : i32
    %c0_i32_0 = arith.constant 0 : i32
    %c0_i32_1 = arith.constant 0 : i32
    return %c0_i32, %c0_i32_0 : i32, i32
  }
  func.func @transform_17(%arg0: i32) -> (i32, i32) {
    %c0_i32 = arith.constant 0 : i32
    %c0_i32_0 = arith.constant 0 : i32
    %c0_i32_1 = arith.constant 0 : i32
    return %c0_i32, %c0_i32_0 : i32, i32
  }
  func.func @transform_18(%arg0: i32) -> (i32, i32) {
    %c0_i32 = arith.constant 0 : i32
    %c0_i32_0 = arith.constant 0 : i32
    %c0_i32_1 = arith.constant 0 : i32
    return %c0_i32, %c0_i32_0 : i32, i32
  }
  func.func @transform_19(%arg0: i32) -> (i32, i32) {
    %c0_i32 = arith.constant 0 : i32
    %c0_i32_0 = arith.constant 0 : i32
    %c0_i32_1 = arith.constant 0 : i32
    return %c0_i32, %c0_i32_0 : i32, i32
  }
  func.func @transform_20(%arg0: i32) -> (i32, i32, i32) {
    %c0_i32 = arith.constant 0 : i32
    %c0_i32_0 = arith.constant 0 : i32
    %c0_i32_1 = arith.constant 0 : i32
    return %arg0, %c0_i32, %c0_i32_0 : i32, i32, i32
  }
}

</mosaic_0001>

<llo_original>
// kernel: tpu_custom_call.1
$region0: #{tpu_custom_call.1}
  #allocation0 [shape = 'u32[]', space=smem, size = 0x4, offset = 0x4, fixed_abs, tag = 'smem constant byte address 0x4 - core index']
  #allocation1 [shape = 'u32[144,128]{1,0:T(1,128)}', space=vmem, size = 0x12000, scoped, tag = 'internal scratch']
  %s0 = inlined_call_operand.vmem [shape: f32[2,8,32], index: 0, kind: input, shape index: {}]
  %s1 = inlined_call_operand.hbm [shape: f32[2,1,8], index: 1, kind: input, shape index: {}]
  %s2 = inlined_call_operand.vmem [shape: f32[1,32], index: 2, kind: input, shape index: {}]
  %s3 = inlined_call_operand.hbm [shape: f32[1,32], index: 3, kind: input, shape index: {}]
  %s4 = inlined_call_operand.vmem [shape: bf16[2,32,96], index: 4, kind: input, shape index: {}]
  %s5 = inlined_call_operand.hbm [shape: f32[2,1,96], index: 5, kind: input, shape index: {}]
  %s6 = inlined_call_operand.vmem [shape: bf16[2,32,32], index: 6, kind: input, shape index: {}]
  %s7 = inlined_call_operand.hbm [shape: f32[2,1,32], index: 7, kind: input, shape index: {}]
  %s8 = inlined_call_operand.hbm [shape: f32[2,1,32], index: 8, kind: input, shape index: {}]
  %s9 = inlined_call_operand.hbm [shape: f32[2,1,32], index: 9, kind: input, shape index: {}]
  %s10 = inlined_call_operand.vmem [shape: bf16[2,32,64], index: 10, kind: input, shape index: {}]
  %s11 = inlined_call_operand.hbm [shape: f32[2,1,64], index: 11, kind: input, shape index: {}]
  %s12 = inlined_call_operand.vmem [shape: bf16[2,64,32], index: 12, kind: input, shape index: {}]
  %s13 = inlined_call_operand.hbm [shape: f32[2,1,32], index: 13, kind: input, shape index: {}]
  %s14 = inlined_call_operand.vmem [shape: f32[2,1,32], index: 14, kind: input, shape index: {}]
  %s15 = inlined_call_operand.vmem [shape: f32[2,1,32], index: 15, kind: input, shape index: {}]
  %s16 = inlined_call_operand.vmem [shape: bf16[32,32], index: 16, kind: input, shape index: {}]
  %s17 = inlined_call_operand.vmem [shape: f32[1,32], index: 17, kind: input, shape index: {}]
  %s18 = inlined_call_operand.vmem [shape: bf16[32,4], index: 18, kind: input, shape index: {}]
  %s19 = inlined_call_operand.vmem [shape: f32[1,4], index: 19, kind: input, shape index: {}]
  %s20 = inlined_call_operand.hbm [shape: f32[2,1,4], index: 20, kind: output, shape index: {}]
  %s21 = sld [smem:[#allocation0]]
  $region145: #{tpu_custom_call.1} parent=0
    _
  %s23 = ssub.s32 1, %s21
  %s24 = scalar_select 0, %s23, %s21
  $region1: #{tpu_custom_call.1} parent=0
    #allocation2 [shape = 'u8[1024]{0}', space=vmem, size = 0x400, scoped, tag = 'input window, operand 1']
    #allocation3 [shape = 's32[2]{0}', space=sflag, size = 0x8, scoped, tag = 'scoped memory for tpu_custom_call.1']
    #allocation4 [shape = 's32[2]{0}', space=sflag, size = 0x8, scoped, tag = 'scoped memory for tpu_custom_call.1']
    #allocation5 [shape = 'u8[512]{0}', space=vmem, size = 0x400, scoped, tag = 'input window, operand 3, single buffered']
    #allocation6 [shape = 's32[1]{0}', space=sflag, size = 0x4, scoped, tag = 'scoped memory for tpu_custom_call.1']
    #allocation7 [shape = 'u8[1024]{0}', space=vmem, size = 0x400, scoped, tag = 'input window, operand 5, single buffered']
    #allocation8 [shape = 'u8[1024]{0}', space=vmem, size = 0x400, scoped, tag = 'input window, operand 7, single buffered']
    #allocation9 [shape = 's32[1]{0}', space=sflag, size = 0x4, scoped, tag = 'scoped memory for tpu_custom_call.1']
    #allocation10 [shape = 'u8[1024]{0}', space=vmem, size = 0x400, scoped, tag = 'input window, operand 8, single buffered']
    #allocation11 [shape = 'u8[1024]{0}', space=vmem, size = 0x400, scoped, tag = 'input window, operand 9, single buffered']
    #allocation12 [shape = 's32[1]{0}', space=sflag, size = 0x4, scoped, tag = 'scoped memory for tpu_custom_call.1']
    #allocation13 [shape = 'u8[1024]{0}', space=vmem, size = 0x400, scoped, tag = 'input window, operand 11, single buffered']
    #allocation14 [shape = 'u8[1024]{0}', space=vmem, size = 0x400, scoped, tag = 'input window, operand 13, single buffered']
    #allocation15 [shape = 's32[1]{0}', space=sflag, size = 0x4, scoped, tag = 'scoped memory for tpu_custom_call.1']
    #allocation16 [shape = 'u8[1024]{0}', space=vmem, size = 0x400, scoped, tag = 'output window, operand 0']
    %25 = vsyncpa [#allocation3], 0
    %s26 = scalar_lea.sflag [#allocation3], 1
    %27 = vsyncpa %s26, 0
    %28 = vsyncpa [#allocation6], 0
    %29 = vsyncpa [#allocation9], 0
    %30 = vsyncpa [#allocation12], 0
    %31 = vsyncpa [#allocation15], 0
    %32 = vsyncpa [#allocation4], 0
    %s33 = scalar_lea.sflag [#allocation4], 1
    %34 = vsyncpa %s33, 0
    loop: start=0, step=1, limit=4
    $region2: #{tpu_custom_call.1} parent=1 // loop_pre_header
      _
    $region3: #{tpu_custom_call.1} parent=1 // loop_header
      %s36 = sphi 0, %s40
      %p37 = scmp.ge.s32.totalorder %s36, 4
      %s46 = sphi 0, %s48
      %s49 = sphi 0, %s46
      %s50 = sphi 0, %s49
      %s66 = sphi 0, %s50
      %s72 = sphi 0, %s74
      %s75 = sphi 0, %s72
      %s76 = sphi 0, %s75
      %s92 = sphi 0, %s76
      %s96 = sphi 0, %s96
      %s98 = sphi 0, %s96
      %s99 = sphi 0, %s98
      %s113 = sphi 0, %s99
      %s117 = sphi 0, %s117
      %s119 = sphi 0, %s117
      %s120 = sphi 0, %s119
      %s134 = sphi 0, %s120
      %s138 = sphi 0, %s138
      %s140 = sphi 0, %s138
      %s141 = sphi 0, %s140
      %s155 = sphi 0, %s141
      %s159 = sphi 0, %s159
      %s161 = sphi 0, %s159
      %s162 = sphi 0, %s161
      %s176 = sphi 0, %s162
      %s180 = sphi 0, %s180
      %s182 = sphi 0, %s180
      %s183 = sphi 0, %s182
      %s197 = sphi 0, %s183
      %s201 = sphi 0, %s201
      %s203 = sphi 0, %s201
      %s204 = sphi 0, %s203
      %s218 = sphi 0, %s204
      %s222 = sphi 0, %s222
      %s224 = sphi 0, %s222
      %s225 = sphi 0, %s224
      %s239 = sphi 0, %s225
      %s243 = sphi 0, %s243
      %s245 = sphi 0, %s243
      %s246 = sphi 0, %s245
      %s260 = sphi 0, %s246
      %s264 = sphi 0, %s264
      %s266 = sphi 0, %s264
      %s267 = sphi 0, %s266
      %s281 = sphi 0, %s267
      %s285 = sphi 0, %s285
      %s287 = sphi 0, %s285
      %s288 = sphi 0, %s287
      %s302 = sphi 0, %s288
      %s306 = sphi 0, %s306
      %s308 = sphi 0, %s306
      %s309 = sphi 0, %s308
      %s323 = sphi 0, %s309
      %s327 = sphi 0, %s327
      %s329 = sphi 0, %s327
      %s330 = sphi 0, %s329
      %s344 = sphi 0, %s330
      %s348 = sphi 0, %s348
      %s350 = sphi 0, %s348
      %s351 = sphi 0, %s350
      %s365 = sphi 0, %s351
      %s369 = sphi 0, %s369
      %s371 = sphi 0, %s369
      %s372 = sphi 0, %s371
      %s386 = sphi 0, %s372
      %s390 = sphi 0, %s390
      %s392 = sphi 0, %s390
      %s393 = sphi 0, %s392
      %s407 = sphi 0, %s393
      %s411 = sphi 0, %s411
      %s413 = sphi 0, %s411
      %s414 = sphi 0, %s413
      %s428 = sphi 0, %s414
      %s432 = sphi 0, %s432
      %s434 = sphi 0, %s432
      %s435 = sphi 0, %s434
      %s449 = sphi 0, %s435
      %s453 = sphi 0, %s453
      %s455 = sphi 0, %s453
      %s456 = sphi 0, %s455
      %s470 = sphi 0, %s456
      %s476 = sphi 0, %s478
      %s479 = sphi 0, %s476
      %s480 = sphi 0, %s479
      %s496 = sphi 0, %s480
    $region4: #{tpu_custom_call.1} parent=1 // loop_header_branch
      %39 = sbr.rel (%p37) target = $region8
    $region5: #{tpu_custom_call.1} parent=1 // loop_body
      %s41 = ssub.s32 %s36, 1
      %s42 = ssub.s32 %s36, 2
      %s43 = sadd.s32 %s36, 1
      %s44 = ssub.s32 %s36, %s43
      %p45 = scmp.eq.s32.totalorder %s44, 0
      %s47 = sadd.s32 %s46, 1
      %s48 = scalar_select %p45, %s46, %s47
      %p51 = pneg %p45
      %p52 = scmp.eq.s32.totalorder %s36, 1
      %p53 = por %p51, %p52
      %p54 = scmp.ne.s32.totalorder %s46, %s49
      %p55 = scmp.eq.s32.totalorder %s36, 0
      %p56 = por %p54, %p55
      %p57 = scmp.ne.s32.totalorder %s46, %s49
      %p58 = scmp.eq.s32.totalorder %s41, 1
      %p59 = por %p57, %p58
      %p60 = scmp.ne.s32.totalorder %s49, %s50
      %p61 = scmp.eq.s32.totalorder %s41, 0
      %p62 = por %p60, %p61
      %p63 = scmp.ne.s32.totalorder %s49, %s50
      %p64 = scmp.eq.s32.totalorder %s42, 1
      %p65 = por %p63, %p64
      %p67 = scmp.ne.s32.totalorder %s50, %s66
      %p68 = scmp.eq.s32.totalorder %s42, 0
      %p69 = por %p67, %p68
      %s70 = ssub.s32 %s36, %s43
      %p71 = scmp.eq.s32.totalorder %s70, 0
      %s73 = sadd.s32 %s72, 1
      %s74 = scalar_select %p71, %s72, %s73
      %p77 = pneg %p71
      %p78 = scmp.eq.s32.totalorder %s36, 1
      %p79 = por %p77, %p78
      %p80 = scmp.ne.s32.totalorder %s72, %s75
      %p81 = scmp.eq.s32.totalorder %s36, 0
      %p82 = por %p80, %p81
      %p83 = scmp.ne.s32.totalorder %s72, %s75
      %p84 = scmp.eq.s32.totalorder %s41, 1
      %p85 = por %p83, %p84
      %p86 = scmp.ne.s32.totalorder %s75, %s76
      %p87 = scmp.eq.s32.totalorder %s41, 0
      %p88 = por %p86, %p87
      %p89 = scmp.ne.s32.totalorder %s75, %s76
      %p90 = scmp.eq.s32.totalorder %s42, 1
      %p91 = por %p89, %p90
      %p93 = scmp.ne.s32.totalorder %s76, %s92
      %p94 = scmp.eq.s32.totalorder %s42, 0
      %p95 = por %p93, %p94
      %s97 = sadd.s32 %s96, 1
      %p100 = scmp.eq.s32.totalorder %s36, 1
      %p101 = scmp.ne.s32.totalorder %s96, %s98
      %p102 = scmp.eq.s32.totalorder %s36, 0
      %p103 = por %p101, %p102
      %p104 = scmp.ne.s32.totalorder %s96, %s98
      %p105 = scmp.eq.s32.totalorder %s41, 1
      %p106 = por %p104, %p105
      %p107 = scmp.ne.s32.totalorder %s98, %s99
      %p108 = scmp.eq.s32.totalorder %s41, 0
      %p109 = por %p107, %p108
      %p110 = scmp.ne.s32.totalorder %s98, %s99
      %p111 = scmp.eq.s32.totalorder %s42, 1
      %p112 = por %p110, %p111
      %p114 = scmp.ne.s32.totalorder %s99, %s113
      %p115 = scmp.eq.s32.totalorder %s42, 0
      %p116 = por %p114, %p115
      %s118 = sadd.s32 %s117, 1
      %p121 = scmp.eq.s32.totalorder %s36, 1
      %p122 = scmp.ne.s32.totalorder %s117, %s119
      %p123 = scmp.eq.s32.totalorder %s36, 0
      %p124 = por %p122, %p123
      %p125 = scmp.ne.s32.totalorder %s117, %s119
      %p126 = scmp.eq.s32.totalorder %s41, 1
      %p127 = por %p125, %p126
      %p128 = scmp.ne.s32.totalorder %s119, %s120
      %p129 = scmp.eq.s32.totalorder %s41, 0
      %p130 = por %p128, %p129
      %p131 = scmp.ne.s32.totalorder %s119, %s120
      %p132 = scmp.eq.s32.totalorder %s42, 1
      %p133 = por %p131, %p132
      %p135 = scmp.ne.s32.totalorder %s120, %s134
      %p136 = scmp.eq.s32.totalorder %s42, 0
      %p137 = por %p135, %p136
      %s139 = sadd.s32 %s138, 1
      %p142 = scmp.eq.s32.totalorder %s36, 1
      %p143 = scmp.ne.s32.totalorder %s138, %s140
      %p144 = scmp.eq.s32.totalorder %s36, 0
      %p145 = por %p143, %p144
      %p146 = scmp.ne.s32.totalorder %s138, %s140
      %p147 = scmp.eq.s32.totalorder %s41, 1
      %p148 = por %p146, %p147
      %p149 = scmp.ne.s32.totalorder %s140, %s141
      %p150 = scmp.eq.s32.totalorder %s41, 0
      %p151 = por %p149, %p150
      %p152 = scmp.ne.s32.totalorder %s140, %s141
      %p153 = scmp.eq.s32.totalorder %s42, 1
      %p154 = por %p152, %p153
      %p156 = scmp.ne.s32.totalorder %s141, %s155
      %p157 = scmp.eq.s32.totalorder %s42, 0
      %p158 = por %p156, %p157
      %s160 = sadd.s32 %s159, 1
      %p163 = scmp.eq.s32.totalorder %s36, 1
      %p164 = scmp.ne.s32.totalorder %s159, %s161
      %p165 = scmp.eq.s32.totalorder %s36, 0
      %p166 = por %p164, %p165
      %p167 = scmp.ne.s32.totalorder %s159, %s161
      %p168 = scmp.eq.s32.totalorder %s41, 1
      %p169 = por %p167, %p168
      %p170 = scmp.ne.s32.totalorder %s161, %s162
      %p171 = scmp.eq.s32.totalorder %s41, 0
      %p172 = por %p170, %p171
      %p173 = scmp.ne.s32.totalorder %s161, %s162
      %p174 = scmp.eq.s32.totalorder %s42, 1
      %p175 = por %p173, %p174
      %p177 = scmp.ne.s32.totalorder %s162, %s176
      %p178 = scmp.eq.s32.totalorder %s42, 0
      %p179 = por %p177, %p178
      %s181 = sadd.s32 %s180, 1
      %p184 = scmp.eq.s32.totalorder %s36, 1
      %p185 = scmp.ne.s32.totalorder %s180, %s182
      %p186 = scmp.eq.s32.totalorder %s36, 0
      %p187 = por %p185, %p186
      %p188 = scmp.ne.s32.totalorder %s180, %s182
      %p189 = scmp.eq.s32.totalorder %s41, 1
      %p190 = por %p188, %p189
      %p191 = scmp.ne.s32.totalorder %s182, %s183
      %p192 = scmp.eq.s32.totalorder %s41, 0
      %p193 = por %p191, %p192
      %p194 = scmp.ne.s32.totalorder %s182, %s183
      %p195 = scmp.eq.s32.totalorder %s42, 1
      %p196 = por %p194, %p195
      %p198 = scmp.ne.s32.totalorder %s183, %s197
      %p199 = scmp.eq.s32.totalorder %s42, 0
      %p200 = por %p198, %p199
      %s202 = sadd.s32 %s201, 1
      %p205 = scmp.eq.s32.totalorder %s36, 1
      %p206 = scmp.ne.s32.totalorder %s201, %s203
      %p207 = scmp.eq.s32.totalorder %s36, 0
      %p208 = por %p206, %p207
      %p209 = scmp.ne.s32.totalorder %s201, %s203
      %p210 = scmp.eq.s32.totalorder %s41, 1
      %p211 = por %p209, %p210
      %p212 = scmp.ne.s32.totalorder %s203, %s204
      %p213 = scmp.eq.s32.totalorder %s41, 0
      %p214 = por %p212, %p213
      %p215 = scmp.ne.s32.totalorder %s203, %s204
      %p216 = scmp.eq.s32.totalorder %s42, 1
      %p217 = por %p215, %p216
      %p219 = scmp.ne.s32.totalorder %s204, %s218
      %p220 = scmp.eq.s32.totalorder %s42, 0
      %p221 = por %p219, %p220
      %s223 = sadd.s32 %s222, 1
      %p226 = scmp.eq.s32.totalorder %s36, 1
      %p227 = scmp.ne.s32.totalorder %s222, %s224
      %p228 = scmp.eq.s32.totalorder %s36, 0
      %p229 = por %p227, %p228
      %p230 = scmp.ne.s32.totalorder %s222, %s224
      %p231 = scmp.eq.s32.totalorder %s41, 1
      %p232 = por %p230, %p231
      %p233 = scmp.ne.s32.totalorder %s224, %s225
      %p234 = scmp.eq.s32.totalorder %s41, 0
      %p235 = por %p233, %p234
      %p236 = scmp.ne.s32.totalorder %s224, %s225
      %p237 = scmp.eq.s32.totalorder %s42, 1
      %p238 = por %p236, %p237
      %p240 = scmp.ne.s32.totalorder %s225, %s239
      %p241 = scmp.eq.s32.totalorder %s42, 0
      %p242 = por %p240, %p241
      %s244 = sadd.s32 %s243, 1
      %p247 = scmp.eq.s32.totalorder %s36, 1
      %p248 = scmp.ne.s32.totalorder %s243, %s245
      %p249 = scmp.eq.s32.totalorder %s36, 0
      %p250 = por %p248, %p249
      %p251 = scmp.ne.s32.totalorder %s243, %s245
      %p252 = scmp.eq.s32.totalorder %s41, 1
      %p253 = por %p251, %p252
      %p254 = scmp.ne.s32.totalorder %s245, %s246
      %p255 = scmp.eq.s32.totalorder %s41, 0
      %p256 = por %p254, %p255
      %p257 = scmp.ne.s32.totalorder %s245, %s246
      %p258 = scmp.eq.s32.totalorder %s42, 1
      %p259 = por %p257, %p258
      %p261 = scmp.ne.s32.totalorder %s246, %s260
      %p262 = scmp.eq.s32.totalorder %s42, 0
      %p263 = por %p261, %p262
      %s265 = sadd.s32 %s264, 1
      %p268 = scmp.eq.s32.totalorder %s36, 1
      %p269 = scmp.ne.s32.totalorder %s264, %s266
      %p270 = scmp.eq.s32.totalorder %s36, 0
      %p271 = por %p269, %p270
      %p272 = scmp.ne.s32.totalorder %s264, %s266
      %p273 = scmp.eq.s32.totalorder %s41, 1
      %p274 = por %p272, %p273
      %p275 = scmp.ne.s32.totalorder %s266, %s267
      %p276 = scmp.eq.s32.totalorder %s41, 0
      %p277 = por %p275, %p276
      %p278 = scmp.ne.s32.totalorder %s266, %s267
      %p279 = scmp.eq.s32.totalorder %s42, 1
      %p280 = por %p278, %p279
      %p282 = scmp.ne.s32.totalorder %s267, %s281
      %p283 = scmp.eq.s32.totalorder %s42, 0
      %p284 = por %p282, %p283
      %s286 = sadd.s32 %s285, 1
      %p289 = scmp.eq.s32.totalorder %s36, 1
      %p290 = scmp.ne.s32.totalorder %s285, %s287
      %p291 = scmp.eq.s32.totalorder %s36, 0
      %p292 = por %p290, %p291
      %p293 = scmp.ne.s32.totalorder %s285, %s287
      %p294 = scmp.eq.s32.totalorder %s41, 1
      %p295 = por %p293, %p294
      %p296 = scmp.ne.s32.totalorder %s287, %s288
      %p297 = scmp.eq.s32.totalorder %s41, 0
      %p298 = por %p296, %p297
      %p299 = scmp.ne.s32.totalorder %s287, %s288
      %p300 = scmp.eq.s32.totalorder %s42, 1
      %p301 = por %p299, %p300
      %p303 = scmp.ne.s32.totalorder %s288, %s302
      %p304 = scmp.eq.s32.totalorder %s42, 0
      %p305 = por %p303, %p304
      %s307 = sadd.s32 %s306, 1
      %p310 = scmp.eq.s32.totalorder %s36, 1
      %p311 = scmp.ne.s32.totalorder %s306, %s308
      %p312 = scmp.eq.s32.totalorder %s36, 0
      %p313 = por %p311, %p312
      %p314 = scmp.ne.s32.totalorder %s306, %s308
      %p315 = scmp.eq.s32.totalorder %s41, 1
      %p316 = por %p314, %p315
      %p317 = scmp.ne.s32.totalorder %s308, %s309
      %p318 = scmp.eq.s32.totalorder %s41, 0
      %p319 = por %p317, %p318
      %p320 = scmp.ne.s32.totalorder %s308, %s309
      %p321 = scmp.eq.s32.totalorder %s42, 1
      %p322 = por %p320, %p321
      %p324 = scmp.ne.s32.totalorder %s309, %s323
      %p325 = scmp.eq.s32.totalorder %s42, 0
      %p326 = por %p324, %p325
      %s328 = sadd.s32 %s327, 1
      %p331 = scmp.eq.s32.totalorder %s36, 1
      %p332 = scmp.ne.s32.totalorder %s327, %s329
      %p333 = scmp.eq.s32.totalorder %s36, 0
      %p334 = por %p332, %p333
      %p335 = scmp.ne.s32.totalorder %s327, %s329
      %p336 = scmp.eq.s32.totalorder %s41, 1
      %p337 = por %p335, %p336
      %p338 = scmp.ne.s32.totalorder %s329, %s330
      %p339 = scmp.eq.s32.totalorder %s41, 0
      %p340 = por %p338, %p339
      %p341 = scmp.ne.s32.totalorder %s329, %s330
      %p342 = scmp.eq.s32.totalorder %s42, 1
      %p343 = por %p341, %p342
      %p345 = scmp.ne.s32.totalorder %s330, %s344
      %p346 = scmp.eq.s32.totalorder %s42, 0
      %p347 = por %p345, %p346
      %s349 = sadd.s32 %s348, 1
      %p352 = scmp.eq.s32.totalorder %s36, 1
      %p353 = scmp.ne.s32.totalorder %s348, %s350
      %p354 = scmp.eq.s32.totalorder %s36, 0
      %p355 = por %p353, %p354
      %p356 = scmp.ne.s32.totalorder %s348, %s350
      %p357 = scmp.eq.s32.totalorder %s41, 1
      %p358 = por %p356, %p357
      %p359 = scmp.ne.s32.totalorder %s350, %s351
      %p360 = scmp.eq.s32.totalorder %s41, 0
      %p361 = por %p359, %p360
      %p362 = scmp.ne.s32.totalorder %s350, %s351
      %p363 = scmp.eq.s32.totalorder %s42, 1
      %p364 = por %p362, %p363
      %p366 = scmp.ne.s32.totalorder %s351, %s365
      %p367 = scmp.eq.s32.totalorder %s42, 0
      %p368 = por %p366, %p367
      %s370 = sadd.s32 %s369, 1
      %p373 = scmp.eq.s32.totalorder %s36, 1
      %p374 = scmp.ne.s32.totalorder %s369, %s371
      %p375 = scmp.eq.s32.totalorder %s36, 0
      %p376 = por %p374, %p375
      %p377 = scmp.ne.s32.totalorder %s369, %s371
      %p378 = scmp.eq.s32.totalorder %s41, 1
      %p379 = por %p377, %p378
      %p380 = scmp.ne.s32.totalorder %s371, %s372
      %p381 = scmp.eq.s32.totalorder %s41, 0
      %p382 = por %p380, %p381
      %p383 = scmp.ne.s32.totalorder %s371, %s372
      %p384 = scmp.eq.s32.totalorder %s42, 1
      %p385 = por %p383, %p384
      %p387 = scmp.ne.s32.totalorder %s372, %s386
      %p388 = scmp.eq.s32.totalorder %s42, 0
      %p389 = por %p387, %p388
      %s391 = sadd.s32 %s390, 1
      %p394 = scmp.eq.s32.totalorder %s36, 1
      %p395 = scmp.ne.s32.totalorder %s390, %s392
      %p396 = scmp.eq.s32.totalorder %s36, 0
      %p397 = por %p395, %p396
      %p398 = scmp.ne.s32.totalorder %s390, %s392
      %p399 = scmp.eq.s32.totalorder %s41, 1
      %p400 = por %p398, %p399
      %p401 = scmp.ne.s32.totalorder %s392, %s393
      %p402 = scmp.eq.s32.totalorder %s41, 0
      %p403 = por %p401, %p402
      %p404 = scmp.ne.s32.totalorder %s392, %s393
      %p405 = scmp.eq.s32.totalorder %s42, 1
      %p406 = por %p404, %p405
      %p408 = scmp.ne.s32.totalorder %s393, %s407
      %p409 = scmp.eq.s32.totalorder %s42, 0
      %p410 = por %p408, %p409
      %s412 = sadd.s32 %s411, 1
      %p415 = scmp.eq.s32.totalorder %s36, 1
      %p416 = scmp.ne.s32.totalorder %s411, %s413
      %p417 = scmp.eq.s32.totalorder %s36, 0
      %p418 = por %p416, %p417
      %p419 = scmp.ne.s32.totalorder %s411, %s413
      %p420 = scmp.eq.s32.totalorder %s41, 1
      %p421 = por %p419, %p420
      %p422 = scmp.ne.s32.totalorder %s413, %s414
      %p423 = scmp.eq.s32.totalorder %s41, 0
      %p424 = por %p422, %p423
      %p425 = scmp.ne.s32.totalorder %s413, %s414
      %p426 = scmp.eq.s32.totalorder %s42, 1
      %p427 = por %p425, %p426
      %p429 = scmp.ne.s32.totalorder %s414, %s428
      %p430 = scmp.eq.s32.totalorder %s42, 0
      %p431 = por %p429, %p430
      %s433 = sadd.s32 %s432, 1
      %p436 = scmp.eq.s32.totalorder %s36, 1
      %p437 = scmp.ne.s32.totalorder %s432, %s434
      %p438 = scmp.eq.s32.totalorder %s36, 0
      %p439 = por %p437, %p438
      %p440 = scmp.ne.s32.totalorder %s432, %s434
      %p441 = scmp.eq.s32.totalorder %s41, 1
      %p442 = por %p440, %p441
      %p443 = scmp.ne.s32.totalorder %s434, %s435
      %p444 = scmp.eq.s32.totalorder %s41, 0
      %p445 = por %p443, %p444
      %p446 = scmp.ne.s32.totalorder %s434, %s435
      %p447 = scmp.eq.s32.totalorder %s42, 1
      %p448 = por %p446, %p447
      %p450 = scmp.ne.s32.totalorder %s435, %s449
      %p451 = scmp.eq.s32.totalorder %s42, 0
      %p452 = por %p450, %p451
      %s454 = sadd.s32 %s453, 1
      %p457 = scmp.eq.s32.totalorder %s36, 1
      %p458 = scmp.ne.s32.totalorder %s453, %s455
      %p459 = scmp.eq.s32.totalorder %s36, 0
      %p460 = por %p458, %p459
      %p461 = scmp.ne.s32.totalorder %s453, %s455
      %p462 = scmp.eq.s32.totalorder %s41, 1
      %p463 = por %p461, %p462
      %p464 = scmp.ne.s32.totalorder %s455, %s456
      %p465 = scmp.eq.s32.totalorder %s41, 0
      %p466 = por %p464, %p465
      %p467 = scmp.ne.s32.totalorder %s455, %s456
      %p468 = scmp.eq.s32.totalorder %s42, 1
      %p469 = por %p467, %p468
      %p471 = scmp.ne.s32.totalorder %s456, %s470
      %p472 = scmp.eq.s32.totalorder %s42, 0
      %p473 = por %p471, %p472
      %s474 = ssub.s32 %s36, %s43
      %p475 = scmp.eq.s32.totalorder %s474, 0
      %s477 = sadd.s32 %s476, 1
      %s478 = scalar_select %p475, %s476, %s477
      %p481 = pneg %p475
      %p482 = scmp.eq.s32.totalorder %s36, 1
      %p483 = por %p481, %p482
      %p484 = scmp.ne.s32.totalorder %s476, %s479
      %p485 = scmp.eq.s32.totalorder %s36, 0
      %p486 = por %p484, %p485
      %p487 = scmp.ne.s32.totalorder %s476, %s479
      %p488 = scmp.eq.s32.totalorder %s41, 1
      %p489 = por %p487, %p488
      %p490 = scmp.ne.s32.totalorder %s479, %s480
      %p491 = scmp.eq.s32.totalorder %s41, 0
      %p492 = por %p490, %p491
      %p493 = scmp.ne.s32.totalorder %s479, %s480
      %p494 = scmp.eq.s32.totalorder %s42, 1
      %p495 = por %p493, %p494
      %p497 = scmp.ne.s32.totalorder %s480, %s496
      %p498 = scmp.eq.s32.totalorder %s42, 0
      %p499 = por %p497, %p498
      %p500 = scmp.le.s32.totalorder 1, %s36
      %p501 = scmp.lt.s32.totalorder %s36, 3
      %p502 = pnand %p500, %p501
      %p503 = pneg %p502
      // Predicated region
      $region9: #{tpu_custom_call.1} parent=5 // pred_check
        _
      $region10: #{tpu_custom_call.1} parent=5 // pred_check_branch
        %505 = sbr.rel (%p502) target = $region12
      $region11: #{tpu_custom_call.1} parent=5 // pred_region
        %s506 = ssub.s32 %s36, 1
        // Predicated region
        $region13: #{tpu_custom_call.1} parent=11 // pred_check
          %p507 = pneg %p109
        $region14: #{tpu_custom_call.1} parent=11 // pred_check_branch
          %509 = sbr.rel (%p507) target = $region16
        $region15: #{tpu_custom_call.1} parent=11 // pred_region
          _
        $region16: #{tpu_custom_call.1} parent=11 // pred_fallthru
          _
        // Predicated region
        $region17: #{tpu_custom_call.1} parent=11 // pred_check
          %p510 = pneg %p130
        $region18: #{tpu_custom_call.1} parent=11 // pred_check_branch
          %512 = sbr.rel (%p510) target = $region20
        $region19: #{tpu_custom_call.1} parent=11 // pred_region
          %s514 = ssub.s32 16, 16
          %515 = vsyncadd [#allocation6], %s514
          %s517 = sshll.u32 [#allocation5], 4
          %s518 = int_to_ptr.vmem [resolvable:$true] %s517
          %520 = dma.hbm_to_vmem [thread:$0]  %s3, 16, %s518, [#allocation6]
        $region20: #{tpu_custom_call.1} parent=11 // pred_fallthru
          _
        // Predicated region
        $region21: #{tpu_custom_call.1} parent=11 // pred_check
          %p521 = pneg %p151
        $region22: #{tpu_custom_call.1} parent=11 // pred_check_branch
          %523 = sbr.rel (%p521) target = $region24
        $region23: #{tpu_custom_call.1} parent=11 // pred_region
          _
        $region24: #{tpu_custom_call.1} parent=11 // pred_fallthru
          _
        // Predicated region
        $region25: #{tpu_custom_call.1} parent=11 // pred_check
          %p524 = pneg %p172
        $region26: #{tpu_custom_call.1} parent=11 // pred_check_branch
          %526 = sbr.rel (%p524) target = $region28
        $region27: #{tpu_custom_call.1} parent=11 // pred_region
          %s528 = ssub.s32 32, 32
          %529 = vsyncadd [#allocation6], %s528
          %s530 = sshll.u32 [#allocation7], 4
          %s531 = int_to_ptr.vmem [resolvable:$true] %s530
          %536 = dma.hbm_to_vmem [thread:$0]  %s5, 32, %s531, [#allocation6], 16, 16, 1
        $region28: #{tpu_custom_call.1} parent=11 // pred_fallthru
          _
        // Predicated region
        $region29: #{tpu_custom_call.1} parent=11 // pred_check
          %p537 = pneg %p193
        $region30: #{tpu_custom_call.1} parent=11 // pred_check_branch
          %539 = sbr.rel (%p537) target = $region32
        $region31: #{tpu_custom_call.1} parent=11 // pred_region
          _
        $region32: #{tpu_custom_call.1} parent=11 // pred_fallthru
          _
        // Predicated region
        $region33: #{tpu_custom_call.1} parent=11 // pred_check
          %p540 = pneg %p214
        $region34: #{tpu_custom_call.1} parent=11 // pred_check_branch
          %542 = sbr.rel (%p540) target = $region36
        $region35: #{tpu_custom_call.1} parent=11 // pred_region
          %s544 = ssub.s32 32, 32
          %545 = vsyncadd [#allocation9], %s544
          %s546 = sshll.u32 [#allocation8], 4
          %s547 = int_to_ptr.vmem [resolvable:$true] %s546
          %552 = dma.hbm_to_vmem [thread:$0]  %s7, 32, %s547, [#allocation9], 16, 16, 1
        $region36: #{tpu_custom_call.1} parent=11 // pred_fallthru
          _
        // Predicated region
        $region37: #{tpu_custom_call.1} parent=11 // pred_check
          %p553 = pneg %p235
        $region38: #{tpu_custom_call.1} parent=11 // pred_check_branch
          %555 = sbr.rel (%p553) target = $region40
        $region39: #{tpu_custom_call.1} parent=11 // pred_region
          %s557 = ssub.s32 32, 32
          %558 = vsyncadd [#allocation9], %s557
          %s559 = sshll.u32 [#allocation10], 4
          %s560 = int_to_ptr.vmem [resolvable:$true] %s559
          %565 = dma.hbm_to_vmem [thread:$0]  %s8, 32, %s560, [#allocation9], 16, 16, 1
        $region40: #{tpu_custom_call.1} parent=11 // pred_fallthru
          _
        // Predicated region
        $region41: #{tpu_custom_call.1} parent=11 // pred_check
          %p566 = pneg %p256
        $region42: #{tpu_custom_call.1} parent=11 // pred_check_branch
          %568 = sbr.rel (%p566) target = $region44
        $region43: #{tpu_custom_call.1} parent=11 // pred_region
          %s570 = ssub.s32 32, 32
          %571 = vsyncadd [#allocation12], %s570
          %s572 = sshll.u32 [#allocation11], 4
          %s573 = int_to_ptr.vmem [resolvable:$true] %s572
          %578 = dma.hbm_to_vmem [thread:$0]  %s9, 32, %s573, [#allocation12], 16, 16, 1
        $region44: #{tpu_custom_call.1} parent=11 // pred_fallthru
          _
        // Predicated region
        $region45: #{tpu_custom_call.1} parent=11 // pred_check
          %p579 = pneg %p277
        $region46: #{tpu_custom_call.1} parent=11 // pred_check_branch
          %581 = sbr.rel (%p579) target = $region48
        $region47: #{tpu_custom_call.1} parent=11 // pred_region
          _
        $region48: #{tpu_custom_call.1} parent=11 // pred_fallthru
          _
        // Predicated region
        $region49: #{tpu_custom_call.1} parent=11 // pred_check
          %p582 = pneg %p298
        $region50: #{tpu_custom_call.1} parent=11 // pred_check_branch
          %584 = sbr.rel (%p582) target = $region52
        $region51: #{tpu_custom_call.1} parent=11 // pred_region
          %s586 = ssub.s32 32, 32
          %587 = vsyncadd [#allocation12], %s586
          %s588 = sshll.u32 [#allocation13], 4
          %s589 = int_to_ptr.vmem [resolvable:$true] %s588
          %594 = dma.hbm_to_vmem [thread:$0]  %s11, 32, %s589, [#allocation12], 16, 16, 1
        $region52: #{tpu_custom_call.1} parent=11 // pred_fallthru
          _
        // Predicated region
        $region53: #{tpu_custom_call.1} parent=11 // pred_check
          %p595 = pneg %p319
        $region54: #{tpu_custom_call.1} parent=11 // pred_check_branch
          %597 = sbr.rel (%p595) target = $region56
        $region55: #{tpu_custom_call.1} parent=11 // pred_region
          _
        $region56: #{tpu_custom_call.1} parent=11 // pred_fallthru
          _
        // Predicated region
        $region57: #{tpu_custom_call.1} parent=11 // pred_check
          %p598 = pneg %p340
        $region58: #{tpu_custom_call.1} parent=11 // pred_check_branch
          %600 = sbr.rel (%p598) target = $region60
        $region59: #{tpu_custom_call.1} parent=11 // pred_region
          %s602 = ssub.s32 32, 32
          %603 = vsyncadd [#allocation15], %s602
          %s604 = sshll.u32 [#allocation14], 4
          %s605 = int_to_ptr.vmem [resolvable:$true] %s604
          %610 = dma.hbm_to_vmem [thread:$0]  %s13, 32, %s605, [#allocation15], 16, 16, 1
        $region60: #{tpu_custom_call.1} parent=11 // pred_fallthru
          _
        // Predicated region
        $region61: #{tpu_custom_call.1} parent=11 // pred_check
          %p611 = pneg %p361
        $region62: #{tpu_custom_call.1} parent=11 // pred_check_branch
          %613 = sbr.rel (%p611) target = $region64
        $region63: #{tpu_custom_call.1} parent=11 // pred_region
          _
        $region64: #{tpu_custom_call.1} parent=11 // pred_fallthru
          _
        // Predicated region
        $region65: #{tpu_custom_call.1} parent=11 // pred_check
          %p614 = pneg %p382
        $region66: #{tpu_custom_call.1} parent=11 // pred_check_branch
          %616 = sbr.rel (%p614) target = $region68
        $region67: #{tpu_custom_call.1} parent=11 // pred_region
          _
        $region68: #{tpu_custom_call.1} parent=11 // pred_fallthru
          _
        // Predicated region
        $region69: #{tpu_custom_call.1} parent=11 // pred_check
          %p617 = pneg %p403
        $region70: #{tpu_custom_call.1} parent=11 // pred_check_branch
          %619 = sbr.rel (%p617) target = $region72
        $region71: #{tpu_custom_call.1} parent=11 // pred_region
          _
        $region72: #{tpu_custom_call.1} parent=11 // pred_fallthru
          _
        // Predicated region
        $region73: #{tpu_custom_call.1} parent=11 // pred_check
          %p620 = pneg %p424
        $region74: #{tpu_custom_call.1} parent=11 // pred_check_branch
          %622 = sbr.rel (%p620) target = $region76
        $region75: #{tpu_custom_call.1} parent=11 // pred_region
          _
        $region76: #{tpu_custom_call.1} parent=11 // pred_fallthru
          _
        // Predicated region
        $region77: #{tpu_custom_call.1} parent=11 // pred_check
          %p623 = pneg %p445
        $region78: #{tpu_custom_call.1} parent=11 // pred_check_branch
          %625 = sbr.rel (%p623) target = $region80
        $region79: #{tpu_custom_call.1} parent=11 // pred_region
          _
        $region80: #{tpu_custom_call.1} parent=11 // pred_fallthru
          _
        // Predicated region
        $region81: #{tpu_custom_call.1} parent=11 // pred_check
          %p626 = pneg %p466
        $region82: #{tpu_custom_call.1} parent=11 // pred_check_branch
          %628 = sbr.rel (%p626) target = $region84
        $region83: #{tpu_custom_call.1} parent=11 // pred_region
          _
        $region84: #{tpu_custom_call.1} parent=11 // pred_fallthru
          _
      $region12: #{tpu_custom_call.1} parent=5 // pred_fallthru
        _
      %p629 = scmp.lt.s32.totalorder %s36, 2
      // Predicated region
      $region85: #{tpu_custom_call.1} parent=5 // pred_check
        %p630 = pneg %p629
      $region86: #{tpu_custom_call.1} parent=5 // pred_check_branch
        %632 = sbr.rel (%p630) target = $region88
      $region87: #{tpu_custom_call.1} parent=5 // pred_region
        // Predicated region
        $region89: #{tpu_custom_call.1} parent=87 // pred_check
          %p633 = pneg %p56
        $region90: #{tpu_custom_call.1} parent=87 // pred_check_branch
          %635 = sbr.rel (%p633) target = $region92
        $region91: #{tpu_custom_call.1} parent=87 // pred_region
          %p636 = scmp.lt.s32.totalorder %s36, 1
          %s637 = scalar_select %p636, %s36, 1
          %s638 = smul.addr %s637, 8
          %s639 = scalar_lea.vmem %s0, %s638
        $region92: #{tpu_custom_call.1} parent=87 // pred_fallthru
          _
        // Predicated region
        $region93: #{tpu_custom_call.1} parent=87 // pred_check
          %p640 = pneg %p82
        $region94: #{tpu_custom_call.1} parent=87 // pred_check_branch
          %642 = sbr.rel (%p640) target = $region96
        $region95: #{tpu_custom_call.1} parent=87 // pred_region
          %s643 = sand.u32 %s72, 1
          %s644 = scalar_lea.sflag [#allocation3], %s643
          %s645 = sand.u32 %s72, 1
          %s646 = scalar_lea.vmem [#allocation2], %s645
          %s648 = ssub.s32 16, 16
          %649 = vsyncadd %s644, %s648
          %s650 = smul.addr %s36, 16
          %s651 = scalar_lea.hbm %s1, %s650
          %s653 = sshll.u32 %s646, 4
          %s654 = int_to_ptr.vmem [resolvable:$true] %s653
          %656 = dma.hbm_to_vmem [thread:$0]  %s651, 16, %s654, %s644
        $region96: #{tpu_custom_call.1} parent=87 // pred_fallthru
          _
      $region88: #{tpu_custom_call.1} parent=5 // pred_fallthru
        _
      %p657 = scmp.le.s32.totalorder 1, %s36
      %p658 = scmp.lt.s32.totalorder %s36, 3
      %p659 = pnand %p657, %p658
      %p660 = pneg %p659
      // Predicated region
      $region97: #{tpu_custom_call.1} parent=5 // pred_check
        _
      $region98: #{tpu_custom_call.1} parent=5 // pred_check_branch
        %662 = sbr.rel (%p659) target = $region100
      $region99: #{tpu_custom_call.1} parent=5 // pred_region
        %s663 = ssub.s32 %s36, 1
        %s664 = sand.u32 %s75, 1
        %s665 = scalar_lea.sflag [#allocation3], %s664
        %s666 = sand.u32 %s75, 1
        %s667 = scalar_lea.vmem [#allocation2], %s666
        // Predicated region
        $region101: #{tpu_custom_call.1} parent=99 // pred_check
          %p668 = pneg %p88
        $region102: #{tpu_custom_call.1} parent=99 // pred_check_branch
          %670 = sbr.rel (%p668) target = $region104
        $region103: #{tpu_custom_call.1} parent=99 // pred_region
          %671 = dma.done %s665, 16
        $region104: #{tpu_custom_call.1} parent=99 // pred_fallthru
          _
        // Predicated region
        $region105: #{tpu_custom_call.1} parent=99 // pred_check
          %p672 = pneg %p130
        $region106: #{tpu_custom_call.1} parent=99 // pred_check_branch
          %674 = sbr.rel (%p672) target = $region108
        $region107: #{tpu_custom_call.1} parent=99 // pred_region
          %675 = dma.done [#allocation6], 16
        $region108: #{tpu_custom_call.1} parent=99 // pred_fallthru
          _
        // Predicated region
        $region109: #{tpu_custom_call.1} parent=99 // pred_check
          %p676 = pneg %p172
        $region110: #{tpu_custom_call.1} parent=99 // pred_check_branch
          %678 = sbr.rel (%p676) target = $region112
        $region111: #{tpu_custom_call.1} parent=99 // pred_region
          %679 = dma.done [#allocation6], 32
        $region112: #{tpu_custom_call.1} parent=99 // pred_fallthru
          _
        // Predicated region
        $region113: #{tpu_custom_call.1} parent=99 // pred_check
          %p680 = pneg %p214
        $region114: #{tpu_custom_call.1} parent=99 // pred_check_branch
          %682 = sbr.rel (%p680) target = $region116
        $region115: #{tpu_custom_call.1} parent=99 // pred_region
          %683 = dma.done [#allocation9], 32
        $region116: #{tpu_custom_call.1} parent=99 // pred_fallthru
          _
        // Predicated region
        $region117: #{tpu_custom_call.1} parent=99 // pred_check
          %p684 = pneg %p235
        $region118: #{tpu_custom_call.1} parent=99 // pred_check_branch
          %686 = sbr.rel (%p684) target = $region120
        $region119: #{tpu_custom_call.1} parent=99 // pred_region
          %687 = dma.done [#allocation9], 32
        $region120: #{tpu_custom_call.1} parent=99 // pred_fallthru
          _
        // Predicated region
        $region121: #{tpu_custom_call.1} parent=99 // pred_check
          %p688 = pneg %p256
        $region122: #{tpu_custom_call.1} parent=99 // pred_check_branch
          %690 = sbr.rel (%p688) target = $region124
        $region123: #{tpu_custom_call.1} parent=99 // pred_region
          %691 = dma.done [#allocation12], 32
        $region124: #{tpu_custom_call.1} parent=99 // pred_fallthru
          _
        // Predicated region
        $region125: #{tpu_custom_call.1} parent=99 // pred_check
          %p692 = pneg %p298
        $region126: #{tpu_custom_call.1} parent=99 // pred_check_branch
          %694 = sbr.rel (%p692) target = $region128
        $region127: #{tpu_custom_call.1} parent=99 // pred_region
          %695 = dma.done [#allocation12], 32
        $region128: #{tpu_custom_call.1} parent=99 // pred_fallthru
          _
        // Predicated region
        $region129: #{tpu_custom_call.1} parent=99 // pred_check
          %p696 = pneg %p340
        $region130: #{tpu_custom_call.1} parent=99 // pred_check_branch
          %698 = sbr.rel (%p696) target = $region132
        $region131: #{tpu_custom_call.1} parent=99 // pred_region
          %699 = dma.done [#allocation15], 32
        $region132: #{tpu_custom_call.1} parent=99 // pred_fallthru
          _
        %p700 = scmp.lt.s32.totalorder %s41, 1
        %s701 = scalar_select %p700, %s41, 1
        %s702 = smul.addr %s701, 8
        %s703 = scalar_lea.vmem %s0, %s702
        %p704 = pneg %p62
        %p705 = pneg %p59
        %s706 = sand.u32 %s75, 1
        %s707 = scalar_lea.sflag [#allocation3], %s706
        %s708 = sand.u32 %s75, 1
        %s709 = scalar_lea.vmem [#allocation2], %s708
        %p710 = pneg %p88
        %p711 = pneg %p85
        %p712 = pneg %p109
        %p713 = pneg %p106
        %p714 = pneg %p130
        %p715 = pneg %p127
        %p716 = pneg %p151
        %p717 = pneg %p148
        %p718 = pneg %p172
        %p719 = pneg %p169
        %p720 = pneg %p193
        %p721 = pneg %p190
        %p722 = pneg %p214
        %p723 = pneg %p211
        %p724 = pneg %p235
        %p725 = pneg %p232
        %p726 = pneg %p256
        %p727 = pneg %p253
        %p728 = pneg %p277
        %p729 = pneg %p274
        %p730 = pneg %p298
        %p731 = pneg %p295
        %p732 = pneg %p319
        %p733 = pneg %p316
        %p734 = pneg %p340
        %p735 = pneg %p337
        %p736 = pneg %p361
        %p737 = pneg %p358
        %p738 = pneg %p382
        %p739 = pneg %p379
        %p740 = pneg %p403
        %p741 = pneg %p400
        %p742 = pneg %p424
        %p743 = pneg %p421
        %p744 = pneg %p445
        %p745 = pneg %p442
        %p746 = pneg %p466
        %p747 = pneg %p463
        %p748 = pneg %p492
        %p749 = pneg %p489
        %s750 = sand.u32 %s479, 1
        %s751 = scalar_lea.sflag [#allocation4], %s750
        %s752 = sand.u32 %s479, 1
        %s753 = scalar_lea.vmem [#allocation16], %s752
        %p754 = scmp.lt.s32.totalorder %s41, 1
        %s755 = scalar_select %p754, %s41, 1
        %s756 = smul.addr %s755, 8
        %s757 = scalar_lea.vmem %s0, %s756
        %v759 = vld [vmem:[%s757] sm:$0xff]
        %v760 = vld [vmem:[%s2] sm:$0x1]
        %v761 = vld [vmem:[#allocation5] sm:$0x1]
        %vm762 = vcmask 261120
        %v763 = vsel %vm762, %v759, 0.0
        %764 = vadd.xlane.f32.xlu0 %v763
        %v765 = vpop.xlane.xlu0 %764
        %v766 = vrcp.pop 32.0
        %v767 = vmul.f32 %v765, %v766
        %v768 = vsub.f32 %v759, %v767
        %v769 = vmul.f32 %v768, %v768
        %v770 = vsel %vm762, %v769, 0.0
        %771 = vadd.xlane.f32.xlu0 %v770
        %v772 = vpop.xlane.xlu0 %771
        %v773 = vmul.f32 %v772, %v766
        %v774 = vadd.f32 %v773, 1e-12
        %v775 = vrsqrt.pop %v774
        %v776 = vmul.f32 %v768, %v775
        %v778 = vlaneseq
        %v779 = vshrl.u32 %v778, 7
        %v780 = vsub.s32 0, %v779
        %v781 = vrot.slane %v760, %v780
        %v783 = vmul.f32 %v776, %v781
        %v785 = vlaneseq
        %v786 = vshrl.u32 %v785, 7
        %v787 = vsub.s32 0, %v786
        %v788 = vrot.slane %v761, %v787
        %v790 = vadd.f32 %v783, %v788
        %v791 = vld [vmem:[%s667] sm:$0x1]
        %v792 = vld [vmem:[%s4] sm:$0xf]
        %v793 = vld [vmem:[%s4 + $0x4] sm:$0xf]
        %v794 = vld [vmem:[%s4 + $0x8] sm:$0xf]
        %v795 = vld [vmem:[%s4 + $0xc] sm:$0xf]
        %v796 = vpack.c.bf16 %v790, %v790
        %v797 = vld [vmem:[#allocation7] sm:$0x1]
        %v799 = vlaneseq
        %v800 = vshrl.u32 %v799, 7
        %v801 = vsub.s32 0, %v800
        %v802 = vrot.slane %v797, %v801
        %v808 = vunpack.c.l.b16 %v792
        %v809 = vunpack.c.l.b16 %v793
        %v810 = vunpack.c.l.b16 %v794
        %v811 = vunpack.c.l.b16 %v795
        %v812 = vpack.c.b16 %v809, %v808
        %v813 = vpack.c.b16 %v811, %v810
        %v817 = vsel %vm762, %v796, 0
        %819 = vmatprep.subr.bf16.mxu0 0
        %820 = vmatpush1.bf16.msra.mxu0 %v812
        %821 = vmatprep.subr.bf16.mxu0 0
        %822 = vmatpush1.bf16.msra.mxu0 %v813
        %823 = vmatprep.subr.bf16.mxu0 0
        %824 = vmatpush1.bf16.msra.mxu0 0
        %825 = vmatprep.subr.bf16.mxu0 0
        %826 = vmatpush1.bf16.msra.mxu0 0
        %827 = vmatprep.subr.bf16.mxu0 0
        %828 = vmatpush1.bf16.msra.mxu0 0
        %829 = vmatprep.subr.bf16.mxu0 0
        %830 = vmatpush1.bf16.msra.mxu0 0
        %831 = vmatprep.subr.bf16.mxu0 0
        %832 = vmatpush1.bf16.msra.mxu0 0
        %833 = vmatprep.subr.bf16.mxu0 0
        %834 = vmatpush1.bf16.msra.mxu0 0
        %835 = vmatprep.subr.bf16.mxu0 0
        %836 = vmatpush1.bf16.msra.mxu0 0
        %837 = vmatprep.subr.bf16.mxu0 0
        %838 = vmatpush1.bf16.msra.mxu0 0
        %839 = vmatprep.subr.bf16.mxu0 0
        %840 = vmatpush1.bf16.msra.mxu0 0
        %841 = vmatprep.subr.bf16.mxu0 0
        %842 = vmatpush1.bf16.msra.mxu0 0
        %843 = vmatprep.subr.bf16.mxu0 0
        %844 = vmatpush1.bf16.msra.mxu0 0
        %845 = vmatprep.subr.bf16.mxu0 0
        %846 = vmatpush1.bf16.msra.mxu0 0
        %847 = vmatprep.subr.bf16.mxu0 0
        %848 = vmatpush1.bf16.msra.mxu0 0
        %849 = vmatprep.subr.bf16.mxu0 0
        %850 = vmatpush1.bf16.msra.mxu0 0
        %851 = vmatprep.mubr.bf16.mxu0 0
        %852 = vmatmul.mubr.bf16.gmra.mrb[0].mxu0 %v817
        %v853 = vpop.f32.mrb[0].mxu0
        %v854 = vadd.f32 %v802, %v853
        %v855 = vpop.f32.mrb[0].mxu0
        %v856 = vpop.f32.mrb[0].mxu0
        %v857 = vpop.f32.mrb[0].mxu0
        %858 = vdwg.mxu0
        %v859 = vld [vmem:[%s6] sm:$0xf]
        %v860 = vld [vmem:[%s6 + $0x4] sm:$0xf]
        %v861 = vld [vmem:[%s6 + $0x8] sm:$0xf]
        %v862 = vld [vmem:[%s6 + $0xc] sm:$0xf]
        %v863 = vpack.c.bf16 %v854, %v854
        %865 = vrot.lane.b32.xlu0 %v863, 96
        %v866 = vpop.permute.xlu0 %865
        %vm867 = vcmask 130048
        %v869 = vsel %vm867, %v863, 0
        %v872 = vsel %vm867, %v866, 0
        %874 = vmatprep.subr.bf16.mxu0 0
        %875 = vmatpush1.bf16.xpose.msra.mxu0 %v872
        %876 = vmatprep.subr.bf16.mxu0 0
        %877 = vmatpush1.bf16.xpose.msra.mxu0 0
        %878 = vmatprep.subr.bf16.mxu0 0
        %879 = vmatpush1.bf16.xpose.msra.mxu0 0
        %880 = vmatprep.subr.bf16.mxu0 0
        %881 = vmatpush1.bf16.xpose.msra.mxu0 0
        %882 = vmatprep.subr.bf16.mxu0 0
        %883 = vmatpush1.bf16.xpose.msra.mxu0 0
        %884 = vmatprep.subr.bf16.mxu0 0
        %885 = vmatpush1.bf16.xpose.msra.mxu0 0
        %886 = vmatprep.subr.bf16.mxu0 0
        %887 = vmatpush1.bf16.xpose.msra.mxu0 0
        %888 = vmatprep.subr.bf16.mxu0 0
        %889 = vmatpush1.bf16.xpose.msra.mxu0 0
        %890 = vmatprep.subr.bf16.mxu0 0
        %891 = vmatpush1.bf16.xpose.msra.mxu0 0
        %892 = vmatprep.subr.bf16.mxu0 0
        %893 = vmatpush1.bf16.xpose.msra.mxu0 0
        %894 = vmatprep.subr.bf16.mxu0 0
        %895 = vmatpush1.bf16.xpose.msra.mxu0 0
        %896 = vmatprep.subr.bf16.mxu0 0
        %897 = vmatpush1.bf16.xpose.msra.mxu0 0
        %898 = vmatprep.subr.bf16.mxu0 0
        %899 = vmatpush1.bf16.xpose.msra.mxu0 0
        %900 = vmatprep.subr.bf16.mxu0 0
        %901 = vmatpush1.bf16.xpose.msra.mxu0 0
        %902 = vmatprep.subr.bf16.mxu0 0
        %903 = vmatpush1.bf16.xpose.msra.mxu0 0
        %904 = vmatprep.subr.bf16.mxu0 0
        %905 = vmatpush1.bf16.xpose.msra.mxu0 0
        %906 = vmatprep.mubr.bf16.mxu0 0
        %907 = vmatmul.mubr.bf16.gmra.mrb[0].mxu0 %v869
        %v908 = vpop.f32.mrb[0].mxu0
        %v909 = vadd.f32 0.0, %v908
        %v910 = vpop.f32.mrb[0].mxu0
        %v911 = vpop.f32.mrb[0].mxu0
        %v912 = vpop.f32.mrb[0].mxu0
        %913 = vdwg.mxu0
        %v914 = vmul.f32 %v909, 0.25
        %v916 = vlaneseq
        %v917 = vshrl.u32 %v916, 7
        %v918 = vsub.s32 0, %v917
        %v919 = vrot.slane %v791, %v918
        %v921 = vadd.f32 %v914, %v919
        %vm922 = vcmask 64512
        %v923 = vsel %vm922, %v921, -inf
        %924 = vmax.xlane.f32.xlu0 %v923
        %v925 = vpop.xlane.xlu0 %924
        %v926 = vsub.f32 %v921, %v925
        %v927 = vmul.f32 %v926, 1.442695
        %v928 = vpow.pop %v927
        %v929 = vsel %vm922, %v928, 0.0
        %930 = vadd.xlane.f32.xlu0 %v929
        %v931 = vpop.xlane.xlu0 %930
        %v932 = vrcp.pop %v931
        %v933 = vmul.f32 %v928, %v932
        %v934 = vpack.c.bf16 %v933, %v933
        %935 = vrot.lane.b32.xlu0 %v863, 64
        %v936 = vpop.permute.xlu0 %935
        %v938 = vsel %vm922, %v934, 0
        %vm940 = vcmask 1043456
        %v942 = vsel %vm940, %v936, 0
        %944 = vmatprep.subr.bf16.mxu0 0
        %945 = vmatpush1.bf16.msra.mxu0 %v942
        %946 = vmatprep.subr.bf16.mxu0 0
        %947 = vmatpush1.bf16.msra.mxu0 0
        %948 = vmatprep.subr.bf16.mxu0 0
        %949 = vmatpush1.bf16.msra.mxu0 0
        %950 = vmatprep.subr.bf16.mxu0 0
        %951 = vmatpush1.bf16.msra.mxu0 0
        %952 = vmatprep.subr.bf16.mxu0 0
        %953 = vmatpush1.bf16.msra.mxu0 0
        %954 = vmatprep.subr.bf16.mxu0 0
        %955 = vmatpush1.bf16.msra.mxu0 0
        %956 = vmatprep.subr.bf16.mxu0 0
        %957 = vmatpush1.bf16.msra.mxu0 0
        %958 = vmatprep.subr.bf16.mxu0 0
        %959 = vmatpush1.bf16.msra.mxu0 0
        %960 = vmatprep.subr.bf16.mxu0 0
        %961 = vmatpush1.bf16.msra.mxu0 0
        %962 = vmatprep.subr.bf16.mxu0 0
        %963 = vmatpush1.bf16.msra.mxu0 0
        %964 = vmatprep.subr.bf16.mxu0 0
        %965 = vmatpush1.bf16.msra.mxu0 0
        %966 = vmatprep.subr.bf16.mxu0 0
        %967 = vmatpush1.bf16.msra.mxu0 0
        %968 = vmatprep.subr.bf16.mxu0 0
        %969 = vmatpush1.bf16.msra.mxu0 0
        %970 = vmatprep.subr.bf16.mxu0 0
        %971 = vmatpush1.bf16.msra.mxu0 0
        %972 = vmatprep.subr.bf16.mxu0 0
        %973 = vmatpush1.bf16.msra.mxu0 0
        %974 = vmatprep.subr.bf16.mxu0 0
        %975 = vmatpush1.bf16.msra.mxu0 0
        %976 = vmatprep.mubr.bf16.mxu0 0
        %977 = vmatmul.mubr.bf16.gmra.mrb[0].mxu0 %v938
        %v978 = vpop.f32.mrb[0].mxu0
        %v979 = vadd.f32 0.0, %v978
        %v980 = vpop.f32.mrb[0].mxu0
        %v981 = vpop.f32.mrb[0].mxu0
        %v982 = vpop.f32.mrb[0].mxu0
        %983 = vdwg.mxu0
        %v984 = vpack.c.bf16 %v979, %v979
        %985 = vrot.lane.b32.xlu0 %v863, 112
        %v986 = vpop.permute.xlu0 %985
        %987 = vrot.lane.b32.xlu0 %v863, 80
        %v988 = vpop.permute.xlu0 %987
        %v990 = vsel %vm867, %v986, 0
        %v993 = vsel %vm867, %v988, 0
        %995 = vmatprep.subr.bf16.mxu0 0
        %996 = vmatpush1.bf16.xpose.msra.mxu0 %v993
        %997 = vmatprep.subr.bf16.mxu0 0
        %998 = vmatpush1.bf16.xpose.msra.mxu0 0
        %999 = vmatprep.subr.bf16.mxu0 0
        %1000 = vmatpush1.bf16.xpose.msra.mxu0 0
        %1001 = vmatprep.subr.bf16.mxu0 0
        %1002 = vmatpush1.bf16.xpose.msra.mxu0 0
        %1003 = vmatprep.subr.bf16.mxu0 0
        %1004 = vmatpush1.bf16.xpose.msra.mxu0 0
        %1005 = vmatprep.subr.bf16.mxu0 0
        %1006 = vmatpush1.bf16.xpose.msra.mxu0 0
        %1007 = vmatprep.subr.bf16.mxu0 0
        %1008 = vmatpush1.bf16.xpose.msra.mxu0 0
        %1009 = vmatprep.subr.bf16.mxu0 0
        %1010 = vmatpush1.bf16.xpose.msra.mxu0 0
        %1011 = vmatprep.subr.bf16.mxu0 0
        %1012 = vmatpush1.bf16.xpose.msra.mxu0 0
        %1013 = vmatprep.subr.bf16.mxu0 0
        %1014 = vmatpush1.bf16.xpose.msra.mxu0 0
        %1015 = vmatprep.subr.bf16.mxu0 0
        %1016 = vmatpush1.bf16.xpose.msra.mxu0 0
        %1017 = vmatprep.subr.bf16.mxu0 0
        %1018 = vmatpush1.bf16.xpose.msra.mxu0 0
        %1019 = vmatprep.subr.bf16.mxu0 0
        %1020 = vmatpush1.bf16.xpose.msra.mxu0 0
        %1021 = vmatprep.subr.bf16.mxu0 0
        %1022 = vmatpush1.bf16.xpose.msra.mxu0 0
        %1023 = vmatprep.subr.bf16.mxu0 0
        %1024 = vmatpush1.bf16.xpose.msra.mxu0 0
        %1025 = vmatprep.subr.bf16.mxu0 0
        %1026 = vmatpush1.bf16.xpose.msra.mxu0 0
        %1027 = vmatprep.mubr.bf16.mxu0 0
        %1028 = vmatmul.mubr.bf16.gmra.mrb[0].mxu0 %v990
        %v1029 = vpop.f32.mrb[0].mxu0
        %v1030 = vadd.f32 0.0, %v1029
        %v1031 = vpop.f32.mrb[0].mxu0
        %v1032 = vpop.f32.mrb[0].mxu0
        %v1033 = vpop.f32.mrb[0].mxu0
        %1034 = vdwg.mxu0
        %v1035 = vmul.f32 %v1030, 0.25
        %v1036 = vadd.f32 %v1035, %v919
        %v1037 = vsel %vm922, %v1036, -inf
        %1038 = vmax.xlane.f32.xlu0 %v1037
        %v1039 = vpop.xlane.xlu0 %1038
        %v1040 = vsub.f32 %v1036, %v1039
        %v1041 = vmul.f32 %v1040, 1.442695
        %v1042 = vpow.pop %v1041
        %v1043 = vsel %vm922, %v1042, 0.0
        %1044 = vadd.xlane.f32.xlu0 %v1043
        %v1045 = vpop.xlane.xlu0 %1044
        %v1046 = vrcp.pop %v1045
        %v1047 = vmul.f32 %v1042, %v1046
        %v1048 = vpack.c.bf16 %v1047, %v1047
        %1049 = vrot.lane.b32.xlu0 %v863, 48
        %v1050 = vpop.permute.xlu0 %1049
        %v1052 = vsel %vm922, %v1048, 0
        %v1055 = vsel %vm940, %v1050, 0
        %1057 = vmatprep.subr.bf16.mxu0 0
        %1058 = vmatpush1.bf16.msra.mxu0 %v1055
        %1059 = vmatprep.subr.bf16.mxu0 0
        %1060 = vmatpush1.bf16.msra.mxu0 0
        %1061 = vmatprep.subr.bf16.mxu0 0
        %1062 = vmatpush1.bf16.msra.mxu0 0
        %1063 = vmatprep.subr.bf16.mxu0 0
        %1064 = vmatpush1.bf16.msra.mxu0 0
        %1065 = vmatprep.subr.bf16.mxu0 0
        %1066 = vmatpush1.bf16.msra.mxu0 0
        %1067 = vmatprep.subr.bf16.mxu0 0
        %1068 = vmatpush1.bf16.msra.mxu0 0
        %1069 = vmatprep.subr.bf16.mxu0 0
        %1070 = vmatpush1.bf16.msra.mxu0 0
        %1071 = vmatprep.subr.bf16.mxu0 0
        %1072 = vmatpush1.bf16.msra.mxu0 0
        %1073 = vmatprep.subr.bf16.mxu0 0
        %1074 = vmatpush1.bf16.msra.mxu0 0
        %1075 = vmatprep.subr.bf16.mxu0 0
        %1076 = vmatpush1.bf16.msra.mxu0 0
        %1077 = vmatprep.subr.bf16.mxu0 0
        %1078 = vmatpush1.bf16.msra.mxu0 0
        %1079 = vmatprep.subr.bf16.mxu0 0
        %1080 = vmatpush1.bf16.msra.mxu0 0
        %1081 = vmatprep.subr.bf16.mxu0 0
        %1082 = vmatpush1.bf16.msra.mxu0 0
        %1083 = vmatprep.subr.bf16.mxu0 0
        %1084 = vmatpush1.bf16.msra.mxu0 0
        %1085 = vmatprep.subr.bf16.mxu0 0
        %1086 = vmatpush1.bf16.msra.mxu0 0
        %1087 = vmatprep.subr.bf16.mxu0 0
        %1088 = vmatpush1.bf16.msra.mxu0 0
        %1089 = vmatprep.mubr.bf16.mxu0 0
        %1090 = vmatmul.mubr.bf16.gmra.mrb[0].mxu0 %v1052
        %v1091 = vpop.f32.mrb[0].mxu0
        %v1092 = vadd.f32 0.0, %v1091
        %v1093 = vpop.f32.mrb[0].mxu0
        %v1094 = vpop.f32.mrb[0].mxu0
        %v1095 = vpop.f32.mrb[0].mxu0
        %1096 = vdwg.mxu0
        %v1097 = vpack.c.bf16 %v1092, %v1092
        %v1100 = vunpack.c.l.b16 %v861
        %v1101 = vunpack.c.l.b16 %v862
        %v1102 = vpack.c.b16 %v1101, %v1100
        %v1105 = vsel %vm867, %v1097, 0
        %1107 = vmatprep.subr.bf16.mxu0 0
        %1108 = vmatpush1.bf16.msra.mxu0 %v1102
        %1109 = vmatprep.subr.bf16.mxu0 0
        %1110 = vmatpush1.bf16.msra.mxu0 0
        %1111 = vmatprep.subr.bf16.mxu0 0
        %1112 = vmatpush1.bf16.msra.mxu0 0
        %1113 = vmatprep.subr.bf16.mxu0 0
        %1114 = vmatpush1.bf16.msra.mxu0 0
        %1115 = vmatprep.subr.bf16.mxu0 0
        %1116 = vmatpush1.bf16.msra.mxu0 0
        %1117 = vmatprep.subr.bf16.mxu0 0
        %1118 = vmatpush1.bf16.msra.mxu0 0
        %1119 = vmatprep.subr.bf16.mxu0 0
        %1120 = vmatpush1.bf16.msra.mxu0 0
        %1121 = vmatprep.subr.bf16.mxu0 0
        %1122 = vmatpush1.bf16.msra.mxu0 0
        %1123 = vmatprep.subr.bf16.mxu0 0
        %1124 = vmatpush1.bf16.msra.mxu0 0
        %1125 = vmatprep.subr.bf16.mxu0 0
        %1126 = vmatpush1.bf16.msra.mxu0 0
        %1127 = vmatprep.subr.bf16.mxu0 0
        %1128 = vmatpush1.bf16.msra.mxu0 0
        %1129 = vmatprep.subr.bf16.mxu0 0
        %1130 = vmatpush1.bf16.msra.mxu0 0
        %1131 = vmatprep.subr.bf16.mxu0 0
        %1132 = vmatpush1.bf16.msra.mxu0 0
        %1133 = vmatprep.subr.bf16.mxu0 0
        %1134 = vmatpush1.bf16.msra.mxu0 0
        %1135 = vmatprep.subr.bf16.mxu0 0
        %1136 = vmatpush1.bf16.msra.mxu0 0
        %1137 = vmatprep.subr.bf16.mxu0 0
        %1138 = vmatpush1.bf16.msra.mxu0 0
        %1139 = vmatprep.mubr.bf16.mxu0 0
        %1140 = vmatmul.mubr.bf16.gmra.mrb[0].mxu0 %v1105
        %v1141 = vpop.f32.mrb[0].mxu0
        %v1142 = vadd.f32 0.0, %v1141
        %v1143 = vpop.f32.mrb[0].mxu0
        %v1144 = vpop.f32.mrb[0].mxu0
        %v1145 = vpop.f32.mrb[0].mxu0
        %1146 = vdwg.mxu0
        %v1149 = vunpack.c.l.b16 %v859
        %v1150 = vunpack.c.l.b16 %v860
        %v1151 = vpack.c.b16 %v1150, %v1149
        %v1154 = vsel %vm867, %v984, 0
        %1156 = vmatprep.subr.bf16.mxu0 0
        %1157 = vmatpush1.bf16.msra.mxu0 %v1151
        %1158 = vmatprep.subr.bf16.mxu0 0
        %1159 = vmatpush1.bf16.msra.mxu0 0
        %1160 = vmatprep.subr.bf16.mxu0 0
        %1161 = vmatpush1.bf16.msra.mxu0 0
        %1162 = vmatprep.subr.bf16.mxu0 0
        %1163 = vmatpush1.bf16.msra.mxu0 0
        %1164 = vmatprep.subr.bf16.mxu0 0
        %1165 = vmatpush1.bf16.msra.mxu0 0
        %1166 = vmatprep.subr.bf16.mxu0 0
        %1167 = vmatpush1.bf16.msra.mxu0 0
        %1168 = vmatprep.subr.bf16.mxu0 0
        %1169 = vmatpush1.bf16.msra.mxu0 0
        %1170 = vmatprep.subr.bf16.mxu0 0
        %1171 = vmatpush1.bf16.msra.mxu0 0
        %1172 = vmatprep.subr.bf16.mxu0 0
        %1173 = vmatpush1.bf16.msra.mxu0 0
        %1174 = vmatprep.subr.bf16.mxu0 0
        %1175 = vmatpush1.bf16.msra.mxu0 0
        %1176 = vmatprep.subr.bf16.mxu0 0
        %1177 = vmatpush1.bf16.msra.mxu0 0
        %1178 = vmatprep.subr.bf16.mxu0 0
        %1179 = vmatpush1.bf16.msra.mxu0 0
        %1180 = vmatprep.subr.bf16.mxu0 0
        %1181 = vmatpush1.bf16.msra.mxu0 0
        %1182 = vmatprep.subr.bf16.mxu0 0
        %1183 = vmatpush1.bf16.msra.mxu0 0
        %1184 = vmatprep.subr.bf16.mxu0 0
        %1185 = vmatpush1.bf16.msra.mxu0 0
        %1186 = vmatprep.subr.bf16.mxu0 0
        %1187 = vmatpush1.bf16.msra.mxu0 0
        %1188 = vmatprep.mubr.bf16.mxu0 0
        %1189 = vmatmul.mubr.bf16.gmra.mrb[0].mxu0 %v1154
        %v1190 = vpop.f32.mrb[0].mxu0
        %v1191 = vadd.f32 %v1142, %v1190
        %v1192 = vpop.f32.mrb[0].mxu0
        %v1193 = vpop.f32.mrb[0].mxu0
        %v1194 = vpop.f32.mrb[0].mxu0
        %1195 = vdwg.mxu0
        %v1196 = vld [vmem:[#allocation8] sm:$0x1]
        %v1198 = vlaneseq
        %v1199 = vshrl.u32 %v1198, 7
        %v1200 = vsub.s32 0, %v1199
        %v1201 = vrot.slane %v1196, %v1200
        %v1203 = vadd.f32 %v1191, %v1201
        %v1204 = vadd.f32 %v1203, %v790
        %v1205 = vld [vmem:[#allocation10] sm:$0x1]
        %v1206 = vld [vmem:[#allocation11] sm:$0x1]
        %v1207 = vsel %vm762, %v1204, 0.0
        %1208 = vadd.xlane.f32.xlu0 %v1207
        %v1209 = vpop.xlane.xlu0 %1208
        %v1210 = vmul.f32 %v1209, %v766
        %v1211 = vsub.f32 %v1204, %v1210
        %v1212 = vmul.f32 %v1211, %v1211
        %v1213 = vsel %vm762, %v1212, 0.0
        %1214 = vadd.xlane.f32.xlu0 %v1213
        %v1215 = vpop.xlane.xlu0 %1214
        %v1216 = vmul.f32 %v1215, %v766
        %v1217 = vadd.f32 %v1216, 1e-12
        %v1218 = vrsqrt.pop %v1217
        %v1219 = vmul.f32 %v1211, %v1218
        %v1221 = vlaneseq
        %v1222 = vshrl.u32 %v1221, 7
        %v1223 = vsub.s32 0, %v1222
        %v1224 = vrot.slane %v1205, %v1223
        %v1226 = vmul.f32 %v1219, %v1224
        %v1228 = vlaneseq
        %v1229 = vshrl.u32 %v1228, 7
        %v1230 = vsub.s32 0, %v1229
        %v1231 = vrot.slane %v1206, %v1230
        %v1233 = vadd.f32 %v1226, %v1231
        %v1234 = vld [vmem:[%s10] sm:$0xf]
        %v1235 = vld [vmem:[%s10 + $0x4] sm:$0xf]
        %v1236 = vld [vmem:[%s10 + $0x8] sm:$0xf]
        %v1237 = vld [vmem:[%s10 + $0xc] sm:$0xf]
        %v1238 = vpack.c.bf16 %v1233, %v1233
        %v1239 = vld [vmem:[#allocation13] sm:$0x1]
        %v1241 = vlaneseq
        %v1242 = vshrl.u32 %v1241, 7
        %v1243 = vsub.s32 0, %v1242
        %v1244 = vrot.slane %v1239, %v1243
        %v1250 = vunpack.c.l.b16 %v1234
        %v1251 = vunpack.c.l.b16 %v1235
        %v1252 = vunpack.c.l.b16 %v1236
        %v1253 = vunpack.c.l.b16 %v1237
        %v1254 = vpack.c.b16 %v1251, %v1250
        %v1255 = vpack.c.b16 %v1253, %v1252
        %v1259 = vsel %vm762, %v1238, 0
        %1261 = vmatprep.subr.bf16.mxu0 0
        %1262 = vmatpush1.bf16.msra.mxu0 %v1254
        %1263 = vmatprep.subr.bf16.mxu0 0
        %1264 = vmatpush1.bf16.msra.mxu0 %v1255
        %1265 = vmatprep.subr.bf16.mxu0 0
        %1266 = vmatpush1.bf16.msra.mxu0 0
        %1267 = vmatprep.subr.bf16.mxu0 0
        %1268 = vmatpush1.bf16.msra.mxu0 0
        %1269 = vmatprep.subr.bf16.mxu0 0
        %1270 = vmatpush1.bf16.msra.mxu0 0
        %1271 = vmatprep.subr.bf16.mxu0 0
        %1272 = vmatpush1.bf16.msra.mxu0 0
        %1273 = vmatprep.subr.bf16.mxu0 0
        %1274 = vmatpush1.bf16.msra.mxu0 0
        %1275 = vmatprep.subr.bf16.mxu0 0
        %1276 = vmatpush1.bf16.msra.mxu0 0
        %1277 = vmatprep.subr.bf16.mxu0 0
        %1278 = vmatpush1.bf16.msra.mxu0 0
        %1279 = vmatprep.subr.bf16.mxu0 0
        %1280 = vmatpush1.bf16.msra.mxu0 0
        %1281 = vmatprep.subr.bf16.mxu0 0
        %1282 = vmatpush1.bf16.msra.mxu0 0
        %1283 = vmatprep.subr.bf16.mxu0 0
        %1284 = vmatpush1.bf16.msra.mxu0 0
        %1285 = vmatprep.subr.bf16.mxu0 0
        %1286 = vmatpush1.bf16.msra.mxu0 0
        %1287 = vmatprep.subr.bf16.mxu0 0
        %1288 = vmatpush1.bf16.msra.mxu0 0
        %1289 = vmatprep.subr.bf16.mxu0 0
        %1290 = vmatpush1.bf16.msra.mxu0 0
        %1291 = vmatprep.subr.bf16.mxu0 0
        %1292 = vmatpush1.bf16.msra.mxu0 0
        %1293 = vmatprep.mubr.bf16.mxu0 0
        %1294 = vmatmul.mubr.bf16.gmra.mrb[0].mxu0 %v1259
        %v1295 = vpop.f32.mrb[0].mxu0
        %v1296 = vadd.f32 %v1244, %v1295
        %v1297 = vpop.f32.mrb[0].mxu0
        %v1298 = vpop.f32.mrb[0].mxu0
        %v1299 = vpop.f32.mrb[0].mxu0
        %1300 = vdwg.mxu0
        %v1301 = vmul.f32 %v1296, 0.5
        %v1302 = vmul.f32 %v1296, 0.044715
        %v1303 = vmul.f32 %v1302, %v1296
        %v1304 = vmul.f32 %v1303, %v1296
        %v1305 = vadd.f32 %v1296, %v1304
        %v1306 = vmul.f32 %v1305, 0.7978846
        %v1307 = vtanh.pop %v1306
        %v1308 = vadd.f32 %v1307, 1.0
        %v1309 = vmul.f32 %v1301, %v1308
        %v1310 = vld [vmem:[%s12] sm:$0xf]
        %v1311 = vld [vmem:[%s12 + $0x4] sm:$0xf]
        %v1312 = vld [vmem:[%s12 + $0x8] sm:$0xf]
        %v1313 = vld [vmem:[%s12 + $0xc] sm:$0xf]
        %v1314 = vld [vmem:[%s12 + $0x10] sm:$0xf]
        %v1315 = vld [vmem:[%s12 + $0x14] sm:$0xf]
        %v1316 = vld [vmem:[%s12 + $0x18] sm:$0xf]
        %v1317 = vld [vmem:[%s12 + $0x1c] sm:$0xf]
        %v1318 = vpack.c.bf16 %v1309, %v1309
        %v1319 = vld [vmem:[#allocation14] sm:$0x1]
        %v1321 = vlaneseq
        %v1322 = vshrl.u32 %v1321, 7
        %v1323 = vsub.s32 0, %v1322
        %v1324 = vrot.slane %v1319, %v1323
        %v1334 = vunpack.c.l.b16 %v1310
        %v1335 = vunpack.c.l.b16 %v1311
        %v1336 = vunpack.c.l.b16 %v1312
        %v1337 = vunpack.c.l.b16 %v1313
        %v1338 = vunpack.c.l.b16 %v1314
        %v1339 = vunpack.c.l.b16 %v1315
        %v1340 = vunpack.c.l.b16 %v1316
        %v1341 = vunpack.c.l.b16 %v1317
        %v1342 = vpack.c.b16 %v1335, %v1334
        %v1343 = vpack.c.b16 %v1337, %v1336
        %v1344 = vpack.c.b16 %v1339, %v1338
        %v1345 = vpack.c.b16 %v1341, %v1340
        %vm1350 = vcmask 523264
        %v1352 = vsel %vm1350, %v1318, 0
        %1354 = vmatprep.subr.bf16.mxu0 0
        %1355 = vmatpush1.bf16.msra.mxu0 %v1342
        %1356 = vmatprep.subr.bf16.mxu0 0
        %1357 = vmatpush1.bf16.msra.mxu0 %v1343
        %1358 = vmatprep.subr.bf16.mxu0 0
        %1359 = vmatpush1.bf16.msra.mxu0 %v1344
        %1360 = vmatprep.subr.bf16.mxu0 0
        %1361 = vmatpush1.bf16.msra.mxu0 %v1345
        %1362 = vmatprep.subr.bf16.mxu0 0
        %1363 = vmatpush1.bf16.msra.mxu0 0
        %1364 = vmatprep.subr.bf16.mxu0 0
        %1365 = vmatpush1.bf16.msra.mxu0 0
        %1366 = vmatprep.subr.bf16.mxu0 0
        %1367 = vmatpush1.bf16.msra.mxu0 0
        %1368 = vmatprep.subr.bf16.mxu0 0
        %1369 = vmatpush1.bf16.msra.mxu0 0
        %1370 = vmatprep.subr.bf16.mxu0 0
        %1371 = vmatpush1.bf16.msra.mxu0 0
        %1372 = vmatprep.subr.bf16.mxu0 0
        %1373 = vmatpush1.bf16.msra.mxu0 0
        %1374 = vmatprep.subr.bf16.mxu0 0
        %1375 = vmatpush1.bf16.msra.mxu0 0
        %1376 = vmatprep.subr.bf16.mxu0 0
        %1377 = vmatpush1.bf16.msra.mxu0 0
        %1378 = vmatprep.subr.bf16.mxu0 0
        %1379 = vmatpush1.bf16.msra.mxu0 0
        %1380 = vmatprep.subr.bf16.mxu0 0
        %1381 = vmatpush1.bf16.msra.mxu0 0
        %1382 = vmatprep.subr.bf16.mxu0 0
        %1383 = vmatpush1.bf16.msra.mxu0 0
        %1384 = vmatprep.subr.bf16.mxu0 0
        %1385 = vmatpush1.bf16.msra.mxu0 0
        %1386 = vmatprep.mubr.bf16.mxu0 0
        %1387 = vmatmul.mubr.bf16.gmra.mrb[0].mxu0 %v1352
        %v1388 = vpop.f32.mrb[0].mxu0
        %v1389 = vadd.f32 %v1324, %v1388
        %v1390 = vpop.f32.mrb[0].mxu0
        %v1391 = vpop.f32.mrb[0].mxu0
        %v1392 = vpop.f32.mrb[0].mxu0
        %1393 = vdwg.mxu0
        %v1394 = vadd.f32 %v1389, %v1233
        %v1395 = vld [vmem:[%s14] sm:$0x1]
        %v1396 = vld [vmem:[%s15] sm:$0x1]
        %v1397 = vsel %vm762, %v1394, 0.0
        %1398 = vadd.xlane.f32.xlu0 %v1397
        %v1399 = vpop.xlane.xlu0 %1398
        %v1400 = vmul.f32 %v1399, %v766
        %v1401 = vsub.f32 %v1394, %v1400
        %v1402 = vmul.f32 %v1401, %v1401
        %v1403 = vsel %vm762, %v1402, 0.0
        %1404 = vadd.xlane.f32.xlu0 %v1403
        %v1405 = vpop.xlane.xlu0 %1404
        %v1406 = vmul.f32 %v1405, %v766
        %v1407 = vadd.f32 %v1406, 1e-12
        %v1408 = vrsqrt.pop %v1407
        %v1409 = vmul.f32 %v1401, %v1408
        %v1411 = vlaneseq
        %v1412 = vshrl.u32 %v1411, 7
        %v1413 = vsub.s32 0, %v1412
        %v1414 = vrot.slane %v1395, %v1413
        %v1416 = vmul.f32 %v1409, %v1414
        %v1418 = vlaneseq
        %v1419 = vshrl.u32 %v1418, 7
        %v1420 = vsub.s32 0, %v1419
        %v1421 = vrot.slane %v1396, %v1420
        %v1423 = vadd.f32 %v1416, %v1421
        %s1424 = scalar_lea.vmem %s4, 16
        %v1425 = vld [vmem:[%s1424] sm:$0xf]
        %v1426 = vld [vmem:[%s1424 + $0x4] sm:$0xf]
        %v1427 = vld [vmem:[%s1424 + $0x8] sm:$0xf]
        %v1428 = vld [vmem:[%s1424 + $0xc] sm:$0xf]
        %v1429 = vpack.c.bf16 %v1423, %v1423
        %s1430 = scalar_lea.vmem [#allocation7], 1
        %v1431 = vld [vmem:[%s1430] sm:$0x1]
        %v1433 = vlaneseq
        %v1434 = vshrl.u32 %v1433, 7
        %v1435 = vsub.s32 0, %v1434
        %v1436 = vrot.slane %v1431, %v1435
        %v1442 = vunpack.c.l.b16 %v1425
        %v1443 = vunpack.c.l.b16 %v1426
        %v1444 = vunpack.c.l.b16 %v1427
        %v1445 = vunpack.c.l.b16 %v1428
        %v1446 = vpack.c.b16 %v1443, %v1442
        %v1447 = vpack.c.b16 %v1445, %v1444
        %v1451 = vsel %vm762, %v1429, 0
        %1453 = vmatprep.subr.bf16.mxu0 0
        %1454 = vmatpush1.bf16.msra.mxu0 %v1446
        %1455 = vmatprep.subr.bf16.mxu0 0
        %1456 = vmatpush1.bf16.msra.mxu0 %v1447
        %1457 = vmatprep.subr.bf16.mxu0 0
        %1458 = vmatpush1.bf16.msra.mxu0 0
        %1459 = vmatprep.subr.bf16.mxu0 0
        %1460 = vmatpush1.bf16.msra.mxu0 0
        %1461 = vmatprep.subr.bf16.mxu0 0
        %1462 = vmatpush1.bf16.msra.mxu0 0
        %1463 = vmatprep.subr.bf16.mxu0 0
        %1464 = vmatpush1.bf16.msra.mxu0 0
        %1465 = vmatprep.subr.bf16.mxu0 0
        %1466 = vmatpush1.bf16.msra.mxu0 0
        %1467 = vmatprep.subr.bf16.mxu0 0
        %1468 = vmatpush1.bf16.msra.mxu0 0
        %1469 = vmatprep.subr.bf16.mxu0 0
        %1470 = vmatpush1.bf16.msra.mxu0 0
        %1471 = vmatprep.subr.bf16.mxu0 0
        %1472 = vmatpush1.bf16.msra.mxu0 0
        %1473 = vmatprep.subr.bf16.mxu0 0
        %1474 = vmatpush1.bf16.msra.mxu0 0
        %1475 = vmatprep.subr.bf16.mxu0 0
        %1476 = vmatpush1.bf16.msra.mxu0 0
        %1477 = vmatprep.subr.bf16.mxu0 0
        %1478 = vmatpush1.bf16.msra.mxu0 0
        %1479 = vmatprep.subr.bf16.mxu0 0
        %1480 = vmatpush1.bf16.msra.mxu0 0
        %1481 = vmatprep.subr.bf16.mxu0 0
        %1482 = vmatpush1.bf16.msra.mxu0 0
        %1483 = vmatprep.subr.bf16.mxu0 0
        %1484 = vmatpush1.bf16.msra.mxu0 0
        %1485 = vmatprep.mubr.bf16.mxu0 0
        %1486 = vmatmul.mubr.bf16.gmra.mrb[0].mxu0 %v1451
        %v1487 = vpop.f32.mrb[0].mxu0
        %v1488 = vadd.f32 %v1436, %v1487
        %v1489 = vpop.f32.mrb[0].mxu0
        %v1490 = vpop.f32.mrb[0].mxu0
        %v1491 = vpop.f32.mrb[0].mxu0
        %1492 = vdwg.mxu0
        %s1493 = scalar_lea.vmem %s6, 16
        %v1494 = vld [vmem:[%s1493] sm:$0xf]
        %v1495 = vld [vmem:[%s1493 + $0x4] sm:$0xf]
        %v1496 = vld [vmem:[%s1493 + $0x8] sm:$0xf]
        %v1497 = vld [vmem:[%s1493 + $0xc] sm:$0xf]
        %v1498 = vpack.c.bf16 %v1488, %v1488
        %1500 = vrot.lane.b32.xlu0 %v1498, 96
        %v1501 = vpop.permute.xlu0 %1500
        %v1503 = vsel %vm867, %v1498, 0
        %v1506 = vsel %vm867, %v1501, 0
        %1508 = vmatprep.subr.bf16.mxu0 0
        %1509 = vmatpush1.bf16.xpose.msra.mxu0 %v1506
        %1510 = vmatprep.subr.bf16.mxu0 0
        %1511 = vmatpush1.bf16.xpose.msra.mxu0 0
        %1512 = vmatprep.subr.bf16.mxu0 0
        %1513 = vmatpush1.bf16.xpose.msra.mxu0 0
        %1514 = vmatprep.subr.bf16.mxu0 0
        %1515 = vmatpush1.bf16.xpose.msra.mxu0 0
        %1516 = vmatprep.subr.bf16.mxu0 0
        %1517 = vmatpush1.bf16.xpose.msra.mxu0 0
        %1518 = vmatprep.subr.bf16.mxu0 0
        %1519 = vmatpush1.bf16.xpose.msra.mxu0 0
        %1520 = vmatprep.subr.bf16.mxu0 0
        %1521 = vmatpush1.bf16.xpose.msra.mxu0 0
        %1522 = vmatprep.subr.bf16.mxu0 0
        %1523 = vmatpush1.bf16.xpose.msra.mxu0 0
        %1524 = vmatprep.subr.bf16.mxu0 0
        %1525 = vmatpush1.bf16.xpose.msra.mxu0 0
        %1526 = vmatprep.subr.bf16.mxu0 0
        %1527 = vmatpush1.bf16.xpose.msra.mxu0 0
        %1528 = vmatprep.subr.bf16.mxu0 0
        %1529 = vmatpush1.bf16.xpose.msra.mxu0 0
        %1530 = vmatprep.subr.bf16.mxu0 0
        %1531 = vmatpush1.bf16.xpose.msra.mxu0 0
        %1532 = vmatprep.subr.bf16.mxu0 0
        %1533 = vmatpush1.bf16.xpose.msra.mxu0 0
        %1534 = vmatprep.subr.bf16.mxu0 0
        %1535 = vmatpush1.bf16.xpose.msra.mxu0 0
        %1536 = vmatprep.subr.bf16.mxu0 0
        %1537 = vmatpush1.bf16.xpose.msra.mxu0 0
        %1538 = vmatprep.subr.bf16.mxu0 0
        %1539 = vmatpush1.bf16.xpose.msra.mxu0 0
        %1540 = vmatprep.mubr.bf16.mxu0 0
        %1541 = vmatmul.mubr.bf16.gmra.mrb[0].mxu0 %v1503
        %v1542 = vpop.f32.mrb[0].mxu0
        %v1543 = vadd.f32 0.0, %v1542
        %v1544 = vpop.f32.mrb[0].mxu0
        %v1545 = vpop.f32.mrb[0].mxu0
        %v1546 = vpop.f32.mrb[0].mxu0
        %1547 = vdwg.mxu0
        %v1548 = vmul.f32 %v1543, 0.25
        %v1549 = vadd.f32 %v1548, %v919
        %v1550 = vsel %vm922, %v1549, -inf
        %1551 = vmax.xlane.f32.xlu0 %v1550
        %v1552 = vpop.xlane.xlu0 %1551
        %v1553 = vsub.f32 %v1549, %v1552
        %v1554 = vmul.f32 %v1553, 1.442695
        %v1555 = vpow.pop %v1554
        %v1556 = vsel %vm922, %v1555, 0.0
        %1557 = vadd.xlane.f32.xlu0 %v1556
        %v1558 = vpop.xlane.xlu0 %1557
        %v1559 = vrcp.pop %v1558
        %v1560 = vmul.f32 %v1555, %v1559
        %v1561 = vpack.c.bf16 %v1560, %v1560
        %1562 = vrot.lane.b32.xlu0 %v1498, 64
        %v1563 = vpop.permute.xlu0 %1562
        %v1565 = vsel %vm922, %v1561, 0
        %v1568 = vsel %vm940, %v1563, 0
        %1570 = vmatprep.subr.bf16.mxu0 0
        %1571 = vmatpush1.bf16.msra.mxu0 %v1568
        %1572 = vmatprep.subr.bf16.mxu0 0
        %1573 = vmatpush1.bf16.msra.mxu0 0
        %1574 = vmatprep.subr.bf16.mxu0 0
        %1575 = vmatpush1.bf16.msra.mxu0 0
        %1576 = vmatprep.subr.bf16.mxu0 0
        %1577 = vmatpush1.bf16.msra.mxu0 0
        %1578 = vmatprep.subr.bf16.mxu0 0
        %1579 = vmatpush1.bf16.msra.mxu0 0
        %1580 = vmatprep.subr.bf16.mxu0 0
        %1581 = vmatpush1.bf16.msra.mxu0 0
        %1582 = vmatprep.subr.bf16.mxu0 0
        %1583 = vmatpush1.bf16.msra.mxu0 0
        %1584 = vmatprep.subr.bf16.mxu0 0
        %1585 = vmatpush1.bf16.msra.mxu0 0
        %1586 = vmatprep.subr.bf16.mxu0 0
        %1587 = vmatpush1.bf16.msra.mxu0 0
        %1588 = vmatprep.subr.bf16.mxu0 0
        %1589 = vmatpush1.bf16.msra.mxu0 0
        %1590 = vmatprep.subr.bf16.mxu0 0
        %1591 = vmatpush1.bf16.msra.mxu0 0
        %1592 = vmatprep.subr.bf16.mxu0 0
        %1593 = vmatpush1.bf16.msra.mxu0 0
        %1594 = vmatprep.subr.bf16.mxu0 0
        %1595 = vmatpush1.bf16.msra.mxu0 0
        %1596 = vmatprep.subr.bf16.mxu0 0
        %1597 = vmatpush1.bf16.msra.mxu0 0
        %1598 = vmatprep.subr.bf16.mxu0 0
        %1599 = vmatpush1.bf16.msra.mxu0 0
        %1600 = vmatprep.subr.bf16.mxu0 0
        %1601 = vmatpush1.bf16.msra.mxu0 0
        %1602 = vmatprep.mubr.bf16.mxu0 0
        %1603 = vmatmul.mubr.bf16.gmra.mrb[0].mxu0 %v1565
        %v1604 = vpop.f32.mrb[0].mxu0
        %v1605 = vadd.f32 0.0, %v1604
        %v1606 = vpop.f32.mrb[0].mxu0
        %v1607 = vpop.f32.mrb[0].mxu0
        %v1608 = vpop.f32.mrb[0].mxu0
        %1609 = vdwg.mxu0
        %v1610 = vpack.c.bf16 %v1605, %v1605
        %1611 = vrot.lane.b32.xlu0 %v1498, 112
        %v1612 = vpop.permute.xlu0 %1611
        %1613 = vrot.lane.b32.xlu0 %v1498, 80
        %v1614 = vpop.permute.xlu0 %1613
        %v1616 = vsel %vm867, %v1612, 0
        %v1619 = vsel %vm867, %v1614, 0
        %1621 = vmatprep.subr.bf16.mxu0 0
        %1622 = vmatpush1.bf16.xpose.msra.mxu0 %v1619
        %1623 = vmatprep.subr.bf16.mxu0 0
        %1624 = vmatpush1.bf16.xpose.msra.mxu0 0
        %1625 = vmatprep.subr.bf16.mxu0 0
        %1626 = vmatpush1.bf16.xpose.msra.mxu0 0
        %1627 = vmatprep.subr.bf16.mxu0 0
        %1628 = vmatpush1.bf16.xpose.msra.mxu0 0
        %1629 = vmatprep.subr.bf16.mxu0 0
        %1630 = vmatpush1.bf16.xpose.msra.mxu0 0
        %1631 = vmatprep.subr.bf16.mxu0 0
        %1632 = vmatpush1.bf16.xpose.msra.mxu0 0
        %1633 = vmatprep.subr.bf16.mxu0 0
        %1634 = vmatpush1.bf16.xpose.msra.mxu0 0
        %1635 = vmatprep.subr.bf16.mxu0 0
        %1636 = vmatpush1.bf16.xpose.msra.mxu0 0
        %1637 = vmatprep.subr.bf16.mxu0 0
        %1638 = vmatpush1.bf16.xpose.msra.mxu0 0
        %1639 = vmatprep.subr.bf16.mxu0 0
        %1640 = vmatpush1.bf16.xpose.msra.mxu0 0
        %1641 = vmatprep.subr.bf16.mxu0 0
        %1642 = vmatpush1.bf16.xpose.msra.mxu0 0
        %1643 = vmatprep.subr.bf16.mxu0 0
        %1644 = vmatpush1.bf16.xpose.msra.mxu0 0
        %1645 = vmatprep.subr.bf16.mxu0 0
        %1646 = vmatpush1.bf16.xpose.msra.mxu0 0
        %1647 = vmatprep.subr.bf16.mxu0 0
        %1648 = vmatpush1.bf16.xpose.msra.mxu0 0
        %1649 = vmatprep.subr.bf16.mxu0 0
        %1650 = vmatpush1.bf16.xpose.msra.mxu0 0
        %1651 = vmatprep.subr.bf16.mxu0 0
        %1652 = vmatpush1.bf16.xpose.msra.mxu0 0
        %1653 = vmatprep.mubr.bf16.mxu0 0
        %1654 = vmatmul.mubr.bf16.gmra.mrb[0].mxu0 %v1616
        %v1655 = vpop.f32.mrb[0].mxu0
        %v1656 = vadd.f32 0.0, %v1655
        %v1657 = vpop.f32.mrb[0].mxu0
        %v1658 = vpop.f32.mrb[0].mxu0
        %v1659 = vpop.f32.mrb[0].mxu0
        %1660 = vdwg.mxu0
        %v1661 = vmul.f32 %v1656, 0.25
        %v1662 = vadd.f32 %v1661, %v919
        %v1663 = vsel %vm922, %v1662, -inf
        %1664 = vmax.xlane.f32.xlu0 %v1663
        %v1665 = vpop.xlane.xlu0 %1664
        %v1666 = vsub.f32 %v1662, %v1665
        %v1667 = vmul.f32 %v1666, 1.442695
        %v1668 = vpow.pop %v1667
        %v1669 = vsel %vm922, %v1668, 0.0
        %1670 = vadd.xlane.f32.xlu0 %v1669
        %v1671 = vpop.xlane.xlu0 %1670
        %v1672 = vrcp.pop %v1671
        %v1673 = vmul.f32 %v1668, %v1672
        %v1674 = vpack.c.bf16 %v1673, %v1673
        %1675 = vrot.lane.b32.xlu0 %v1498, 48
        %v1676 = vpop.permute.xlu0 %1675
        %v1678 = vsel %vm922, %v1674, 0
        %v1681 = vsel %vm940, %v1676, 0
        %1683 = vmatprep.subr.bf16.mxu0 0
        %1684 = vmatpush1.bf16.msra.mxu0 %v1681
        %1685 = vmatprep.subr.bf16.mxu0 0
        %1686 = vmatpush1.bf16.msra.mxu0 0
        %1687 = vmatprep.subr.bf16.mxu0 0
        %1688 = vmatpush1.bf16.msra.mxu0 0
        %1689 = vmatprep.subr.bf16.mxu0 0
        %1690 = vmatpush1.bf16.msra.mxu0 0
        %1691 = vmatprep.subr.bf16.mxu0 0
        %1692 = vmatpush1.bf16.msra.mxu0 0
        %1693 = vmatprep.subr.bf16.mxu0 0
        %1694 = vmatpush1.bf16.msra.mxu0 0
        %1695 = vmatprep.subr.bf16.mxu0 0
        %1696 = vmatpush1.bf16.msra.mxu0 0
        %1697 = vmatprep.subr.bf16.mxu0 0
        %1698 = vmatpush1.bf16.msra.mxu0 0
        %1699 = vmatprep.subr.bf16.mxu0 0
        %1700 = vmatpush1.bf16.msra.mxu0 0
        %1701 = vmatprep.subr.bf16.mxu0 0
        %1702 = vmatpush1.bf16.msra.mxu0 0
        %1703 = vmatprep.subr.bf16.mxu0 0
        %1704 = vmatpush1.bf16.msra.mxu0 0
        %1705 = vmatprep.subr.bf16.mxu0 0
        %1706 = vmatpush1.bf16.msra.mxu0 0
        %1707 = vmatprep.subr.bf16.mxu0 0
        %1708 = vmatpush1.bf16.msra.mxu0 0
        %1709 = vmatprep.subr.bf16.mxu0 0
        %1710 = vmatpush1.bf16.msra.mxu0 0
        %1711 = vmatprep.subr.bf16.mxu0 0
        %1712 = vmatpush1.bf16.msra.mxu0 0
        %1713 = vmatprep.subr.bf16.mxu0 0
        %1714 = vmatpush1.bf16.msra.mxu0 0
        %1715 = vmatprep.mubr.bf16.mxu0 0
        %1716 = vmatmul.mubr.bf16.gmra.mrb[0].mxu0 %v1678
        %v1717 = vpop.f32.mrb[0].mxu0
        %v1718 = vadd.f32 0.0, %v1717
        %v1719 = vpop.f32.mrb[0].mxu0
        %v1720 = vpop.f32.mrb[0].mxu0
        %v1721 = vpop.f32.mrb[0].mxu0
        %1722 = vdwg.mxu0
        %v1723 = vpack.c.bf16 %v1718, %v1718
        %v1726 = vunpack.c.l.b16 %v1496
        %v1727 = vunpack.c.l.b16 %v1497
        %v1728 = vpack.c.b16 %v1727, %v1726
        %v1731 = vsel %vm867, %v1723, 0
        %1733 = vmatprep.subr.bf16.mxu0 0
        %1734 = vmatpush1.bf16.msra.mxu0 %v1728
        %1735 = vmatprep.subr.bf16.mxu0 0
        %1736 = vmatpush1.bf16.msra.mxu0 0
        %1737 = vmatprep.subr.bf16.mxu0 0
        %1738 = vmatpush1.bf16.msra.mxu0 0
        %1739 = vmatprep.subr.bf16.mxu0 0
        %1740 = vmatpush1.bf16.msra.mxu0 0
        %1741 = vmatprep.subr.bf16.mxu0 0
        %1742 = vmatpush1.bf16.msra.mxu0 0
        %1743 = vmatprep.subr.bf16.mxu0 0
        %1744 = vmatpush1.bf16.msra.mxu0 0
        %1745 = vmatprep.subr.bf16.mxu0 0
        %1746 = vmatpush1.bf16.msra.mxu0 0
        %1747 = vmatprep.subr.bf16.mxu0 0
        %1748 = vmatpush1.bf16.msra.mxu0 0
        %1749 = vmatprep.subr.bf16.mxu0 0
        %1750 = vmatpush1.bf16.msra.mxu0 0
        %1751 = vmatprep.subr.bf16.mxu0 0
        %1752 = vmatpush1.bf16.msra.mxu0 0
        %1753 = vmatprep.subr.bf16.mxu0 0
        %1754 = vmatpush1.bf16.msra.mxu0 0
        %1755 = vmatprep.subr.bf16.mxu0 0
        %1756 = vmatpush1.bf16.msra.mxu0 0
        %1757 = vmatprep.subr.bf16.mxu0 0
        %1758 = vmatpush1.bf16.msra.mxu0 0
        %1759 = vmatprep.subr.bf16.mxu0 0
        %1760 = vmatpush1.bf16.msra.mxu0 0
        %1761 = vmatprep.subr.bf16.mxu0 0
        %1762 = vmatpush1.bf16.msra.mxu0 0
        %1763 = vmatprep.subr.bf16.mxu0 0
        %1764 = vmatpush1.bf16.msra.mxu0 0
        %1765 = vmatprep.mubr.bf16.mxu0 0
        %1766 = vmatmul.mubr.bf16.gmra.mrb[0].mxu0 %v1731
        %v1767 = vpop.f32.mrb[0].mxu0
        %v1768 = vadd.f32 0.0, %v1767
        %v1769 = vpop.f32.mrb[0].mxu0
        %v1770 = vpop.f32.mrb[0].mxu0
        %v1771 = vpop.f32.mrb[0].mxu0
        %1772 = vdwg.mxu0
        %v1775 = vunpack.c.l.b16 %v1494
        %v1776 = vunpack.c.l.b16 %v1495
        %v1777 = vpack.c.b16 %v1776, %v1775
        %v1780 = vsel %vm867, %v1610, 0
        %1782 = vmatprep.subr.bf16.mxu0 0
        %1783 = vmatpush1.bf16.msra.mxu0 %v1777
        %1784 = vmatprep.subr.bf16.mxu0 0
        %1785 = vmatpush1.bf16.msra.mxu0 0
        %1786 = vmatprep.subr.bf16.mxu0 0
        %1787 = vmatpush1.bf16.msra.mxu0 0
        %1788 = vmatprep.subr.bf16.mxu0 0
        %1789 = vmatpush1.bf16.msra.mxu0 0
        %1790 = vmatprep.subr.bf16.mxu0 0
        %1791 = vmatpush1.bf16.msra.mxu0 0
        %1792 = vmatprep.subr.bf16.mxu0 0
        %1793 = vmatpush1.bf16.msra.mxu0 0
        %1794 = vmatprep.subr.bf16.mxu0 0
        %1795 = vmatpush1.bf16.msra.mxu0 0
        %1796 = vmatprep.subr.bf16.mxu0 0
        %1797 = vmatpush1.bf16.msra.mxu0 0
        %1798 = vmatprep.subr.bf16.mxu0 0
        %1799 = vmatpush1.bf16.msra.mxu0 0
        %1800 = vmatprep.subr.bf16.mxu0 0
        %1801 = vmatpush1.bf16.msra.mxu0 0
        %1802 = vmatprep.subr.bf16.mxu0 0
        %1803 = vmatpush1.bf16.msra.mxu0 0
        %1804 = vmatprep.subr.bf16.mxu0 0
        %1805 = vmatpush1.bf16.msra.mxu0 0
        %1806 = vmatprep.subr.bf16.mxu0 0
        %1807 = vmatpush1.bf16.msra.mxu0 0
        %1808 = vmatprep.subr.bf16.mxu0 0
        %1809 = vmatpush1.bf16.msra.mxu0 0
        %1810 = vmatprep.subr.bf16.mxu0 0
        %1811 = vmatpush1.bf16.msra.mxu0 0
        %1812 = vmatprep.subr.bf16.mxu0 0
        %1813 = vmatpush1.bf16.msra.mxu0 0
        %1814 = vmatprep.mubr.bf16.mxu0 0
        %1815 = vmatmul.mubr.bf16.gmra.mrb[0].mxu0 %v1780
        %v1816 = vpop.f32.mrb[0].mxu0
        %v1817 = vadd.f32 %v1768, %v1816
        %v1818 = vpop.f32.mrb[0].mxu0
        %v1819 = vpop.f32.mrb[0].mxu0
        %v1820 = vpop.f32.mrb[0].mxu0
        %1821 = vdwg.mxu0
        %s1822 = scalar_lea.vmem [#allocation8], 1
        %v1823 = vld [vmem:[%s1822] sm:$0x1]
        %v1825 = vlaneseq
        %v1826 = vshrl.u32 %v1825, 7
        %v1827 = vsub.s32 0, %v1826
        %v1828 = vrot.slane %v1823, %v1827
        %v1830 = vadd.f32 %v1817, %v1828
        %v1831 = vadd.f32 %v1830, %v1423
        %s1832 = scalar_lea.vmem [#allocation10], 1
        %v1833 = vld [vmem:[%s1832] sm:$0x1]
        %s1834 = scalar_lea.vmem [#allocation11], 1
        %v1835 = vld [vmem:[%s1834] sm:$0x1]
        %v1836 = vsel %vm762, %v1831, 0.0
        %1837 = vadd.xlane.f32.xlu0 %v1836
        %v1838 = vpop.xlane.xlu0 %1837
        %v1839 = vmul.f32 %v1838, %v766
        %v1840 = vsub.f32 %v1831, %v1839
        %v1841 = vmul.f32 %v1840, %v1840
        %v1842 = vsel %vm762, %v1841, 0.0
        %1843 = vadd.xlane.f32.xlu0 %v1842
        %v1844 = vpop.xlane.xlu0 %1843
        %v1845 = vmul.f32 %v1844, %v766
        %v1846 = vadd.f32 %v1845, 1e-12
        %v1847 = vrsqrt.pop %v1846
        %v1848 = vmul.f32 %v1840, %v1847
        %v1850 = vlaneseq
        %v1851 = vshrl.u32 %v1850, 7
        %v1852 = vsub.s32 0, %v1851
        %v1853 = vrot.slane %v1833, %v1852
        %v1855 = vmul.f32 %v1848, %v1853
        %v1857 = vlaneseq
        %v1858 = vshrl.u32 %v1857, 7
        %v1859 = vsub.s32 0, %v1858
        %v1860 = vrot.slane %v1835, %v1859
        %v1862 = vadd.f32 %v1855, %v1860
        %s1863 = scalar_lea.vmem %s10, 16
        %v1864 = vld [vmem:[%s1863] sm:$0xf]
        %v1865 = vld [vmem:[%s1863 + $0x4] sm:$0xf]
        %v1866 = vld [vmem:[%s1863 + $0x8] sm:$0xf]
        %v1867 = vld [vmem:[%s1863 + $0xc] sm:$0xf]
        %v1868 = vpack.c.bf16 %v1862, %v1862
        %s1869 = scalar_lea.vmem [#allocation13], 1
        %v1870 = vld [vmem:[%s1869] sm:$0x1]
        %v1872 = vlaneseq
        %v1873 = vshrl.u32 %v1872, 7
        %v1874 = vsub.s32 0, %v1873
        %v1875 = vrot.slane %v1870, %v1874
        %v1881 = vunpack.c.l.b16 %v1864
        %v1882 = vunpack.c.l.b16 %v1865
        %v1883 = vunpack.c.l.b16 %v1866
        %v1884 = vunpack.c.l.b16 %v1867
        %v1885 = vpack.c.b16 %v1882, %v1881
        %v1886 = vpack.c.b16 %v1884, %v1883
        %v1890 = vsel %vm762, %v1868, 0
        %1892 = vmatprep.subr.bf16.mxu0 0
        %1893 = vmatpush1.bf16.msra.mxu0 %v1885
        %1894 = vmatprep.subr.bf16.mxu0 0
        %1895 = vmatpush1.bf16.msra.mxu0 %v1886
        %1896 = vmatprep.subr.bf16.mxu0 0
        %1897 = vmatpush1.bf16.msra.mxu0 0
        %1898 = vmatprep.subr.bf16.mxu0 0
        %1899 = vmatpush1.bf16.msra.mxu0 0
        %1900 = vmatprep.subr.bf16.mxu0 0
        %1901 = vmatpush1.bf16.msra.mxu0 0
        %1902 = vmatprep.subr.bf16.mxu0 0
        %1903 = vmatpush1.bf16.msra.mxu0 0
        %1904 = vmatprep.subr.bf16.mxu0 0
        %1905 = vmatpush1.bf16.msra.mxu0 0
        %1906 = vmatprep.subr.bf16.mxu0 0
        %1907 = vmatpush1.bf16.msra.mxu0 0
        %1908 = vmatprep.subr.bf16.mxu0 0
        %1909 = vmatpush1.bf16.msra.mxu0 0
        %1910 = vmatprep.subr.bf16.mxu0 0
        %1911 = vmatpush1.bf16.msra.mxu0 0
        %1912 = vmatprep.subr.bf16.mxu0 0
        %1913 = vmatpush1.bf16.msra.mxu0 0
        %1914 = vmatprep.subr.bf16.mxu0 0
        %1915 = vmatpush1.bf16.msra.mxu0 0
        %1916 = vmatprep.subr.bf16.mxu0 0
        %1917 = vmatpush1.bf16.msra.mxu0 0
        %1918 = vmatprep.subr.bf16.mxu0 0
        %1919 = vmatpush1.bf16.msra.mxu0 0
        %1920 = vmatprep.subr.bf16.mxu0 0
        %1921 = vmatpush1.bf16.msra.mxu0 0
        %1922 = vmatprep.subr.bf16.mxu0 0
        %1923 = vmatpush1.bf16.msra.mxu0 0
        %1924 = vmatprep.mubr.bf16.mxu0 0
        %1925 = vmatmul.mubr.bf16.gmra.mrb[0].mxu0 %v1890
        %v1926 = vpop.f32.mrb[0].mxu0
        %v1927 = vadd.f32 %v1875, %v1926
        %v1928 = vpop.f32.mrb[0].mxu0
        %v1929 = vpop.f32.mrb[0].mxu0
        %v1930 = vpop.f32.mrb[0].mxu0
        %1931 = vdwg.mxu0
        %v1932 = vmul.f32 %v1927, 0.5
        %v1933 = vmul.f32 %v1927, 0.044715
        %v1934 = vmul.f32 %v1933, %v1927
        %v1935 = vmul.f32 %v1934, %v1927
        %v1936 = vadd.f32 %v1927, %v1935
        %v1937 = vmul.f32 %v1936, 0.7978846
        %v1938 = vtanh.pop %v1937
        %v1939 = vadd.f32 %v1938, 1.0
        %v1940 = vmul.f32 %v1932, %v1939
        %s1941 = scalar_lea.vmem %s12, 32
        %v1942 = vld [vmem:[%s1941] sm:$0xf]
        %v1943 = vld [vmem:[%s1941 + $0x4] sm:$0xf]
        %v1944 = vld [vmem:[%s1941 + $0x8] sm:$0xf]
        %v1945 = vld [vmem:[%s1941 + $0xc] sm:$0xf]
        %v1946 = vld [vmem:[%s1941 + $0x10] sm:$0xf]
        %v1947 = vld [vmem:[%s1941 + $0x14] sm:$0xf]
        %v1948 = vld [vmem:[%s1941 + $0x18] sm:$0xf]
        %v1949 = vld [vmem:[%s1941 + $0x1c] sm:$0xf]
        %v1950 = vpack.c.bf16 %v1940, %v1940
        %s1951 = scalar_lea.vmem [#allocation14], 1
        %v1952 = vld [vmem:[%s1951] sm:$0x1]
        %v1954 = vlaneseq
        %v1955 = vshrl.u32 %v1954, 7
        %v1956 = vsub.s32 0, %v1955
        %v1957 = vrot.slane %v1952, %v1956
        %v1967 = vunpack.c.l.b16 %v1942
        %v1968 = vunpack.c.l.b16 %v1943
        %v1969 = vunpack.c.l.b16 %v1944
        %v1970 = vunpack.c.l.b16 %v1945
        %v1971 = vunpack.c.l.b16 %v1946
        %v1972 = vunpack.c.l.b16 %v1947
        %v1973 = vunpack.c.l.b16 %v1948
        %v1974 = vunpack.c.l.b16 %v1949
        %v1975 = vpack.c.b16 %v1968, %v1967
        %v1976 = vpack.c.b16 %v1970, %v1969
        %v1977 = vpack.c.b16 %v1972, %v1971
        %v1978 = vpack.c.b16 %v1974, %v1973
        %v1984 = vsel %vm1350, %v1950, 0
        %1986 = vmatprep.subr.bf16.mxu0 0
        %1987 = vmatpush1.bf16.msra.mxu0 %v1975
        %1988 = vmatprep.subr.bf16.mxu0 0
        %1989 = vmatpush1.bf16.msra.mxu0 %v1976
        %1990 = vmatprep.subr.bf16.mxu0 0
        %1991 = vmatpush1.bf16.msra.mxu0 %v1977
        %1992 = vmatprep.subr.bf16.mxu0 0
        %1993 = vmatpush1.bf16.msra.mxu0 %v1978
        %1994 = vmatprep.subr.bf16.mxu0 0
        %1995 = vmatpush1.bf16.msra.mxu0 0
        %1996 = vmatprep.subr.bf16.mxu0 0
        %1997 = vmatpush1.bf16.msra.mxu0 0
        %1998 = vmatprep.subr.bf16.mxu0 0
        %1999 = vmatpush1.bf16.msra.mxu0 0
        %2000 = vmatprep.subr.bf16.mxu0 0
        %2001 = vmatpush1.bf16.msra.mxu0 0
        %2002 = vmatprep.subr.bf16.mxu0 0
        %2003 = vmatpush1.bf16.msra.mxu0 0
        %2004 = vmatprep.subr.bf16.mxu0 0
        %2005 = vmatpush1.bf16.msra.mxu0 0
        %2006 = vmatprep.subr.bf16.mxu0 0
        %2007 = vmatpush1.bf16.msra.mxu0 0
        %2008 = vmatprep.subr.bf16.mxu0 0
        %2009 = vmatpush1.bf16.msra.mxu0 0
        %2010 = vmatprep.subr.bf16.mxu0 0
        %2011 = vmatpush1.bf16.msra.mxu0 0
        %2012 = vmatprep.subr.bf16.mxu0 0
        %2013 = vmatpush1.bf16.msra.mxu0 0
        %2014 = vmatprep.subr.bf16.mxu0 0
        %2015 = vmatpush1.bf16.msra.mxu0 0
        %2016 = vmatprep.subr.bf16.mxu0 0
        %2017 = vmatpush1.bf16.msra.mxu0 0
        %2018 = vmatprep.mubr.bf16.mxu0 0
        %2019 = vmatmul.mubr.bf16.gmra.mrb[0].mxu0 %v1984
        %v2020 = vpop.f32.mrb[0].mxu0
        %v2021 = vadd.f32 %v1957, %v2020
        %v2022 = vpop.f32.mrb[0].mxu0
        %v2023 = vpop.f32.mrb[0].mxu0
        %v2024 = vpop.f32.mrb[0].mxu0
        %2025 = vdwg.mxu0
        %v2026 = vadd.f32 %v2021, %v1862
        %s2027 = scalar_lea.vmem %s14, 1
        %v2028 = vld [vmem:[%s2027] sm:$0x1]
        %s2029 = scalar_lea.vmem %s15, 1
        %v2030 = vld [vmem:[%s2029] sm:$0x1]
        %v2031 = vsel %vm762, %v2026, 0.0
        %2032 = vadd.xlane.f32.xlu0 %v2031
        %v2033 = vpop.xlane.xlu0 %2032
        %v2034 = vmul.f32 %v2033, %v766
        %v2035 = vsub.f32 %v2026, %v2034
        %v2036 = vmul.f32 %v2035, %v2035
        %v2037 = vsel %vm762, %v2036, 0.0
        %2038 = vadd.xlane.f32.xlu0 %v2037
        %v2039 = vpop.xlane.xlu0 %2038
        %v2040 = vmul.f32 %v2039, %v766
        %v2041 = vadd.f32 %v2040, 1e-12
        %v2042 = vrsqrt.pop %v2041
        %v2043 = vmul.f32 %v2035, %v2042
        %v2045 = vlaneseq
        %v2046 = vshrl.u32 %v2045, 7
        %v2047 = vsub.s32 0, %v2046
        %v2048 = vrot.slane %v2028, %v2047
        %v2050 = vmul.f32 %v2043, %v2048
        %v2052 = vlaneseq
        %v2053 = vshrl.u32 %v2052, 7
        %v2054 = vsub.s32 0, %v2053
        %v2055 = vrot.slane %v2030, %v2054
        %v2057 = vadd.f32 %v2050, %v2055
        %v2058 = vld [vmem:[%s16] sm:$0xf]
        %v2059 = vld [vmem:[%s16 + $0x4] sm:$0xf]
        %v2060 = vld [vmem:[%s16 + $0x8] sm:$0xf]
        %v2061 = vld [vmem:[%s16 + $0xc] sm:$0xf]
        %v2062 = vpack.c.bf16 %v2057, %v2057
        %v2063 = vld [vmem:[%s17] sm:$0x1]
        %v2068 = vunpack.c.l.b16 %v2058
        %v2069 = vunpack.c.l.b16 %v2059
        %v2070 = vunpack.c.l.b16 %v2060
        %v2071 = vunpack.c.l.b16 %v2061
        %v2072 = vpack.c.b16 %v2069, %v2068
        %v2073 = vpack.c.b16 %v2071, %v2070
        %v2077 = vsel %vm762, %v2062, 0
        %2079 = vmatprep.subr.bf16.mxu0 0
        %2080 = vmatpush1.bf16.msra.mxu0 %v2072
        %2081 = vmatprep.subr.bf16.mxu0 0
        %2082 = vmatpush1.bf16.msra.mxu0 %v2073
        %2083 = vmatprep.subr.bf16.mxu0 0
        %2084 = vmatpush1.bf16.msra.mxu0 0
        %2085 = vmatprep.subr.bf16.mxu0 0
        %2086 = vmatpush1.bf16.msra.mxu0 0
        %2087 = vmatprep.subr.bf16.mxu0 0
        %2088 = vmatpush1.bf16.msra.mxu0 0
        %2089 = vmatprep.subr.bf16.mxu0 0
        %2090 = vmatpush1.bf16.msra.mxu0 0
        %2091 = vmatprep.subr.bf16.mxu0 0
        %2092 = vmatpush1.bf16.msra.mxu0 0
        %2093 = vmatprep.subr.bf16.mxu0 0
        %2094 = vmatpush1.bf16.msra.mxu0 0
        %2095 = vmatprep.subr.bf16.mxu0 0
        %2096 = vmatpush1.bf16.msra.mxu0 0
        %2097 = vmatprep.subr.bf16.mxu0 0
        %2098 = vmatpush1.bf16.msra.mxu0 0
        %2099 = vmatprep.subr.bf16.mxu0 0
        %2100 = vmatpush1.bf16.msra.mxu0 0
        %2101 = vmatprep.subr.bf16.mxu0 0
        %2102 = vmatpush1.bf16.msra.mxu0 0
        %2103 = vmatprep.subr.bf16.mxu0 0
        %2104 = vmatpush1.bf16.msra.mxu0 0
        %2105 = vmatprep.subr.bf16.mxu0 0
        %2106 = vmatpush1.bf16.msra.mxu0 0
        %2107 = vmatprep.subr.bf16.mxu0 0
        %2108 = vmatpush1.bf16.msra.mxu0 0
        %2109 = vmatprep.subr.bf16.mxu0 0
        %2110 = vmatpush1.bf16.msra.mxu0 0
        %2111 = vmatprep.mubr.bf16.mxu0 0
        %2112 = vmatmul.mubr.bf16.gmra.mrb[0].mxu0 %v2077
        %v2113 = vpop.f32.mrb[0].mxu0
        %v2114 = vadd.f32 %v2063, %v2113
        %v2115 = vpop.f32.mrb[0].mxu0
        %v2116 = vpop.f32.mrb[0].mxu0
        %v2117 = vpop.f32.mrb[0].mxu0
        %2118 = vdwg.mxu0
        %v2119 = vtanh.pop %v2114
        %v2120 = vld [vmem:[%s18] sm:$0xf]
        %v2121 = vld [vmem:[%s18 + $0x4] sm:$0xf]
        %v2122 = vld [vmem:[%s18 + $0x8] sm:$0xf]
        %v2123 = vld [vmem:[%s18 + $0xc] sm:$0xf]
        %v2124 = vpack.c.bf16 %v2119, %v2119
        %v2125 = vld [vmem:[%s19] sm:$0x1]
        %v2130 = vunpack.c.l.b16 %v2120
        %v2131 = vunpack.c.l.b16 %v2121
        %v2132 = vunpack.c.l.b16 %v2122
        %v2133 = vunpack.c.l.b16 %v2123
        %v2134 = vpack.c.b16 %v2131, %v2130
        %v2135 = vpack.c.b16 %v2133, %v2132
        %v2139 = vsel %vm762, %v2124, 0
        %2141 = vmatprep.subr.bf16.mxu0 0
        %2142 = vmatpush1.bf16.msra.mxu0 %v2134
        %2143 = vmatprep.subr.bf16.mxu0 0
        %2144 = vmatpush1.bf16.msra.mxu0 %v2135
        %2145 = vmatprep.subr.bf16.mxu0 0
        %2146 = vmatpush1.bf16.msra.mxu0 0
        %2147 = vmatprep.subr.bf16.mxu0 0
        %2148 = vmatpush1.bf16.msra.mxu0 0
        %2149 = vmatprep.subr.bf16.mxu0 0
        %2150 = vmatpush1.bf16.msra.mxu0 0
        %2151 = vmatprep.subr.bf16.mxu0 0
        %2152 = vmatpush1.bf16.msra.mxu0 0
        %2153 = vmatprep.subr.bf16.mxu0 0
        %2154 = vmatpush1.bf16.msra.mxu0 0
        %2155 = vmatprep.subr.bf16.mxu0 0
        %2156 = vmatpush1.bf16.msra.mxu0 0
        %2157 = vmatprep.subr.bf16.mxu0 0
        %2158 = vmatpush1.bf16.msra.mxu0 0
        %2159 = vmatprep.subr.bf16.mxu0 0
        %2160 = vmatpush1.bf16.msra.mxu0 0
        %2161 = vmatprep.subr.bf16.mxu0 0
        %2162 = vmatpush1.bf16.msra.mxu0 0
        %2163 = vmatprep.subr.bf16.mxu0 0
        %2164 = vmatpush1.bf16.msra.mxu0 0
        %2165 = vmatprep.subr.bf16.mxu0 0
        %2166 = vmatpush1.bf16.msra.mxu0 0
        %2167 = vmatprep.subr.bf16.mxu0 0
        %2168 = vmatpush1.bf16.msra.mxu0 0
        %2169 = vmatprep.subr.bf16.mxu0 0
        %2170 = vmatpush1.bf16.msra.mxu0 0
        %2171 = vmatprep.subr.bf16.mxu0 0
        %2172 = vmatpush1.bf16.msra.mxu0 0
        %2173 = vmatprep.mubr.bf16.mxu0 0
        %2174 = vmatmul.mubr.bf16.gmra.mrb[0].mxu0 %v2139
        %v2175 = vpop.f32.mrb[0].mxu0
        %v2176 = vadd.f32 %v2125, %v2175
        %v2177 = vpop.f32.mrb[0].mxu0
        %v2178 = vpop.f32.mrb[0].mxu0
        %v2179 = vpop.f32.mrb[0].mxu0
        %2180 = vdwg.mxu0
        %vm2181 = vcmask 24576
        %2182 = vst.msk [vmem:[%s753] sm:$0x1] %vm2181, %v2176
        %s2183 = sand.u32 %s479, 1
        %s2184 = scalar_lea.sflag [#allocation4], %s2183
        %s2185 = sand.u32 %s479, 1
        %s2186 = scalar_lea.vmem [#allocation16], %s2185
        // Predicated region
        $region133: #{tpu_custom_call.1} parent=99 // pred_check
          %p2187 = pneg %p489
        $region134: #{tpu_custom_call.1} parent=99 // pred_check_branch
          %2189 = sbr.rel (%p2187) target = $region136
        $region135: #{tpu_custom_call.1} parent=99 // pred_region
          %s2191 = ssub.s32 16, 16
          %2192 = vsyncadd %s2184, %s2191
          %s2193 = smul.addr %s41, 16
          %s2194 = scalar_lea.hbm %s20, %s2193
          %s2196 = sshll.u32 %s2186, 4
          %s2197 = int_to_ptr.vmem [resolvable:$true] %s2196
          %2199 = dma.vmem_to_hbm [thread:$0]  %s2197, 16, %s2194, %s2184
        $region136: #{tpu_custom_call.1} parent=99 // pred_fallthru
          _
      $region100: #{tpu_custom_call.1} parent=5 // pred_fallthru
        _
      %p2200 = scmp.le.s32.totalorder 2, %s36
      // Predicated region
      $region137: #{tpu_custom_call.1} parent=5 // pred_check
        %p2201 = pneg %p2200
      $region138: #{tpu_custom_call.1} parent=5 // pred_check_branch
        %2203 = sbr.rel (%p2201) target = $region140
      $region139: #{tpu_custom_call.1} parent=5 // pred_region
        %s2204 = ssub.s32 %s36, 2
        // Predicated region
        $region141: #{tpu_custom_call.1} parent=139 // pred_check
          %p2205 = pneg %p495
        $region142: #{tpu_custom_call.1} parent=139 // pred_check_branch
          %2207 = sbr.rel (%p2205) target = $region144
        $region143: #{tpu_custom_call.1} parent=139 // pred_region
          %s2208 = sand.u32 %s480, 1
          %s2209 = scalar_lea.sflag [#allocation4], %s2208
          %s2210 = sand.u32 %s480, 1
          %s2211 = scalar_lea.vmem [#allocation16], %s2210
          %2212 = dma.done %s2209, 16
        $region144: #{tpu_custom_call.1} parent=139 // pred_fallthru
          _
      $region140: #{tpu_custom_call.1} parent=5 // pred_fallthru
        _
    $region6: #{tpu_custom_call.1} parent=1 // loop_footer
      %s40 = sadd.s32 1, %s36
    $region7: #{tpu_custom_call.1} parent=1 // loop_footer_branch
      %35 = sbr.rel target = $region3
    $region8: #{tpu_custom_call.1} parent=1 // loop_exit
      _
    %2213 = vsyncpa [#allocation3], 1
    %s2214 = scalar_lea.sflag [#allocation3], 1
    %2215 = vsyncpa %s2214, 1
    %2216 = vsyncpa [#allocation6], 1
    %2217 = vsyncpa [#allocation9], 1
    %2218 = vsyncpa [#allocation12], 1
    %2219 = vsyncpa [#allocation15], 1
    %2220 = vsyncpa [#allocation4], 1
    %s2221 = scalar_lea.sflag [#allocation4], 1
    %2222 = vsyncpa %s2221, 1

</llo_original>
